<compile_context>
chip_gen: v7x
topology: tpu7x:2x2x1
jax: 0.10.0
libtpu: 0.0.40
codegen_flags: <defaults>
</compile_context>

<pallas_src>
import functools

import jax
import jax.numpy as jnp
from jax.experimental import pallas as pl
from jax.experimental.pallas import tpu as pltpu


def _round_up(x, m):
    return ((x + m - 1) // m) * m


# ----------------------------------------------------------------------------
# Kernel A: GRU cell + dot attention + tanh(concat linear)   (no grid)
# ----------------------------------------------------------------------------
def _rnn_attn_concat_kernel(
    emb_ref,   # (Bp, H)     embedded tokens, compute dtype
    h_ref,     # (Bp, H)     previous hidden state, f32
    enc_ref,   # (Bp, Lp, H) encoder outputs (batch-major, L padded), compute dt
    wih_ref,   # (H, 3H)     GRU input->hidden weights (gate cols r,z,n)
    whh_ref,   # (H, 3H)     GRU hidden->hidden weights
    bih_ref,   # (1, 3H)     f32
    bhh_ref,   # (1, 3H)     f32
    wch_ref,   # (H, H)      concat-linear block applied to h_new
    wcc_ref,   # (H, H)      concat-linear block applied to context
    bc_ref,    # (1, H)      f32
    hid_ref,   # (Bp, H)     out: new hidden state, f32
    attw_ref,  # (Bp, Lp)    out: attention weights, f32 (lane-dense)
    cat_ref,   # (Bp, H)     out: tanh(concat linear), compute dtype
    *,
    valid_len,
):
    H = hid_ref.shape[1]
    cd = emb_ref.dtype
    h = h_ref[...]                                          # (Bp, H) f32

    # ---- GRU cell (PyTorch semantics, gate order r, z, n) -------------------
    gi = jnp.dot(emb_ref[...], wih_ref[...],
                 preferred_element_type=jnp.float32) + bih_ref[...]
    gh = jnp.dot(h.astype(cd), whh_ref[...],
                 preferred_element_type=jnp.float32) + bhh_ref[...]
    r = jax.nn.sigmoid(gi[:, 0 * H:1 * H] + gh[:, 0 * H:1 * H])
    z = jax.nn.sigmoid(gi[:, 1 * H:2 * H] + gh[:, 1 * H:2 * H])
    n = jnp.tanh(gi[:, 2 * H:3 * H] + r * gh[:, 2 * H:3 * H])
    h_new = (1.0 - z) * n + z * h                           # (Bp, H) f32
    hid_ref[...] = h_new

    # ---- dot attention on the MXU (batched over B, query length 1) ---------
    enc = enc_ref[...]                                      # (Bp, Lp, H)
    lp = enc.shape[1]
    scores = jnp.einsum(
        "bqh,blh->bql", h_new.astype(cd)[:, None, :], enc,
        preferred_element_type=jnp.float32)[:, 0, :]        # (Bp, Lp) f32
    if valid_len != lp:
        # Zero-padded key positions -> mask before softmax.
        key_idx = jax.lax.broadcasted_iota(jnp.int32, scores.shape, 1)
        scores = jnp.where(key_idx < valid_len, scores, -1e30)
    m = jnp.max(scores, axis=-1, keepdims=True)
    e = jnp.exp(scores - m)
    denom = jnp.sum(e, axis=-1, keepdims=True)
    attw = e * pl.reciprocal(denom, approx=True)            # EUP slot
    attw_ref[...] = attw

    context = jnp.einsum(
        "bql,blh->bqh", attw.astype(cd)[:, None, :], enc,
        preferred_element_type=jnp.float32)[:, 0, :]        # (Bp, H) f32

    # concat([h_new, context]) @ Wc == h_new @ Wc_top + context @ Wc_bot
    cat = jnp.tanh(
        jnp.dot(h_new.astype(cd), wch_ref[...],
                preferred_element_type=jnp.float32)
        + jnp.dot(context.astype(cd), wcc_ref[...],
                  preferred_element_type=jnp.float32)
        + bc_ref[...])
    cat_ref[...] = cat.astype(cat_ref.dtype)


# ----------------------------------------------------------------------------
# Kernel B: HBM-bound vocabulary projection, tiled over the output dim
# ----------------------------------------------------------------------------
def _vocab_proj_kernel(cat_ref, wo_ref, bo_ref, out_ref):
    out_ref[...] = (
        jnp.dot(cat_ref[...], wo_ref[...], preferred_element_type=jnp.float32)
        + bo_ref[...])


# ----------------------------------------------------------------------------
# One-time parameter re-layout (hoisted out of the per-token decode step)
# ----------------------------------------------------------------------------
def prepare_decoder_params(params, *, tile_o=2048, compute_dtype=jnp.float32,
                           vmem_budget_bytes=48 << 20):
    H = params["w_concat"].shape[0]
    O = params["w_out"].shape[0]
    if H % 128 != 0:
        raise ValueError("hidden_size must be a multiple of 128 (lane tile)")

    f32 = jnp.float32
    cd = compute_dtype
    cd_bytes = jnp.dtype(cd).itemsize

    tile_o = _round_up(max(128, min(tile_o, _round_up(O, 128))), 128)
    # Cap so the double-buffered w_out stream stays inside the VMEM budget.
    max_tile = max(
        128, ((vmem_budget_bytes * 3 // 4) // (2 * H * cd_bytes)) // 128 * 128)
    tile_o = min(tile_o, max_tile)
    o_pad = _round_up(O, tile_o)

    w_concat_t = params["w_concat"].T                        # (2H, H)
    wo = jnp.zeros((H, o_pad), cd).at[:, :O].set(params["w_out"].T.astype(cd))
    bo = jnp.zeros((1, o_pad), f32).at[:, :O].set(params["b_out"][None, :])

    return {
        "embedding": params["embedding"].astype(cd),
        "w_ih_t": params["w_ih"].T.astype(cd),               # (H, 3H)
        "w_hh_t": params["w_hh"].T.astype(cd),               # (H, 3H)
        "b_ih": params["b_ih"][None, :].astype(f32),         # (1, 3H)
        "b_hh": params["b_hh"][None, :].astype(f32),         # (1, 3H)
        "wc_h": w_concat_t[:H].astype(cd),                   # (H, H)
        "wc_c": w_concat_t[H:].astype(cd),                   # (H, H)
        "bc": params["b_concat"][None, :].astype(f32),       # (1, H)
        "wo": wo, "bo": bo,
        "H": H, "O": O, "O_pad": o_pad, "tile_o": tile_o,
        "compute_dtype": cd,
    }


def prepare_encoder_outputs(encoder_outputs, batch_size, *,
                            compute_dtype=jnp.float32):
    """Per-sequence (NOT per-token) encoder re-layout: (L,B,H) -> (Bp,Lp,H)."""
    L, B, H = encoder_outputs.shape
    if B != batch_size:
        raise ValueError("batch mismatch")
    bp = _round_up(max(B, 8), 8)          # f32 sublane tile
    lp = _round_up(max(L, 128), 128)      # lane tile for the attn-weight store
    enc = jnp.transpose(encoder_outputs, (1, 0, 2)).astype(compute_dtype)
    enc = jnp.pad(enc, ((0, bp - B), (0, lp - L), (0, 0)))
    return {"enc": enc, "B": B, "Bp": bp, "L": L, "Lp": lp}


# ----------------------------------------------------------------------------
# Decoder step (matches LuongAttnDecoderRNN.forward, dot attention, n_layers=1)
# ----------------------------------------------------------------------------
def luong_attn_decoder_step(prepared, enc_prep, input_seq, last_hidden):
    """input_seq (1,B) int32, last_hidden (1,B,H), enc_prep from
    prepare_encoder_outputs(). Returns (output (B,O), hidden (1,B,H),
    attn_weights (B,1,L))."""
    if input_seq.shape[0] != 1:
        raise ValueError("Decoder input sequence length should be 1")

    H, O = prepared["H"], prepared["O"]
    o_pad, tile_o = prepared["O_pad"], prepared["tile_o"]
    cd = prepared["compute_dtype"]
    cd_bytes = jnp.dtype(cd).itemsize
    B, Bp = enc_prep["B"], enc_prep["Bp"]
    L, Lp = enc_prep["L"], enc_prep["Lp"]
    if input_seq.shape[1] != B:
        raise ValueError("batch mismatch between input_seq and encoder prep")

    # Glue in XLA: embedding lookup (gather) + batch pad. Dropout = identity.
    embedded = prepared["embedding"][input_seq[0]]                 # (B, H) cd
    h_prev = last_hidden[0].astype(jnp.float32)                    # (B, H) f32
    if Bp != B:
        # Padded batch rows carry finite garbage through sigmoid/tanh/softmax
        # (softmax sees uniform masked scores, no NaNs); sliced off below.
        embedded = jnp.pad(embedded, ((0, Bp - B), (0, 0)))
        h_prev = jnp.pad(h_prev, ((0, Bp - B), (0, 0)))

    # -------------- kernel A: GRU + attention + tanh(concat) ---------------
    a_bytes = int(Bp * H * (cd_bytes + 4)                 # embedded + h_prev
                  + Bp * Lp * H * cd_bytes                # encoder block
                  + 8 * H * H * cd_bytes + 7 * H * 4      # weights + biases
                  + Bp * H * 4 + Bp * Lp * 4 + Bp * H * cd_bytes)   # outputs
    a_flops = int(2 * Bp * H * (6 * H + 2 * Lp + 2 * H))
    a_trans = int(Bp * (4 * H + Lp))
    hid, attw, cat = pl.pallas_call(
        functools.partial(_rnn_attn_concat_kernel, valid_len=L),
        out_shape=(
            jax.ShapeDtypeStruct((Bp, H), jnp.float32),
            jax.ShapeDtypeStruct((Bp, Lp), jnp.float32),
            jax.ShapeDtypeStruct((Bp, H), cd),
        ),
        compiler_params=pltpu.CompilerParams(
            vmem_limit_bytes=min(2 * a_bytes + (16 << 20), 100 << 20)),
        cost_estimate=pl.CostEstimate(
            flops=a_flops, transcendentals=a_trans, bytes_accessed=a_bytes),
    )(embedded, h_prev, enc_prep["enc"],
      prepared["w_ih_t"], prepared["w_hh_t"],
      prepared["b_ih"], prepared["b_hh"],
      prepared["wc_h"], prepared["wc_c"], prepared["bc"])

    # -------------- kernel B: vocabulary projection (HBM bound) ------------
    n_tiles = o_pad // tile_o
    b_bytes = int(H * o_pad * cd_bytes + o_pad * 4
                  + Bp * H * cd_bytes + Bp * o_pad * 4)
    b_vmem = int(2 * (H * tile_o * cd_bytes + tile_o * 4)   # wo/bo double buf
                 + Bp * H * cd_bytes                        # cat (invariant)
                 + 2 * Bp * tile_o * 4                      # out double buf
                 + (4 << 20))                               # margin
    out = pl.pallas_call(
        _vocab_proj_kernel,
        grid=(n_tiles,),
        in_specs=[
            pl.BlockSpec((Bp, H), lambda j: (0, 0)),         # cat (invariant)
            pl.BlockSpec((H, tile_o), lambda j: (0, j)),     # wo tile (stream)
            pl.BlockSpec((1, tile_o), lambda j: (0, j)),     # bo tile
        ],
        out_specs=pl.BlockSpec((Bp, tile_o), lambda j: (0, j)),
        out_shape=jax.ShapeDtypeStruct((Bp, o_pad), jnp.float32),
        compiler_params=pltpu.CompilerParams(
            dimension_semantics=("parallel",),               # megacore on v7x
            vmem_limit_bytes=min(b_vmem, 100 << 20)),
        cost_estimate=pl.CostEstimate(
            flops=int(2 * Bp * H * o_pad), transcendentals=0,
            bytes_accessed=b_bytes),
    )(cat, prepared["wo"], prepared["bo"])

    output = out[:B, :O]
    hidden = hid[:B][None, :, :]
    attn_weights = attw[:B, :L][:, None, :]
    return output, hidden, attn_weights


# ----------------------------------------------------------------------------
# Pure-JAX reference mirroring the PyTorch forward (dot attention)
# ----------------------------------------------------------------------------
def reference_step(params, input_seq, last_hidden, encoder_outputs):
    embedded = params["embedding"][input_seq[0]]          # (B, H)
    h = last_hidden[0]                                    # (B, H)
    H = h.shape[1]

    gi = embedded @ params["w_ih"].T + params["b_ih"]
    gh = h @ params["w_hh"].T + params["b_hh"]
    r = jax.nn.sigmoid(gi[:, :H] + gh[:, :H])
    z = jax.nn.sigmoid(gi[:, H:2 * H] + gh[:, H:2 * H])
    n = jnp.tanh(gi[:, 2 * H:] + r * gh[:, 2 * H:])
    h_new = (1.0 - z) * n + z * h                         # (B, H)

    enc_blh = jnp.transpose(encoder_outputs, (1, 0, 2))   # (B, L, H)
    scores = jnp.einsum("bh,blh->bl", h_new, enc_blh)
    attw = jax.nn.softmax(scores, axis=1)                 # (B, L)
    context = jnp.einsum("bl,blh->bh", attw, enc_blh)     # (B, H)

    concat_in = jnp.concatenate([h_new, context], axis=1)
    concat_out = jnp.tanh(concat_in @ params["w_concat"].T + params["b_concat"])
    out = concat_out @ params["w_out"].T + params["b_out"]
    return out, h_new[None], attw[:, None, :]


def init_params(key, hidden_size, output_size, vocab_size):
    ks = jax.random.split(key, 9)
    H, O, V = hidden_size, output_size, vocab_size
    s = 0.1
    return {
        "embedding": jax.random.normal(ks[0], (V, H), jnp.float32),
        "w_ih": s * jax.random.normal(ks[1], (3 * H, H), jnp.float32),
        "w_hh": s * jax.random.normal(ks[2], (3 * H, H), jnp.float32),
        "b_ih": s * jax.random.normal(ks[3], (3 * H,), jnp.float32),
        "b_hh": s * jax.random.normal(ks[4], (3 * H,), jnp.float32),
        "w_concat": s * jax.random.normal(ks[5], (H, 2 * H), jnp.float32),
        "b_concat": s * jax.random.normal(ks[6], (H,), jnp.float32),
        "w_out": s * jax.random.normal(ks[7], (O, H), jnp.float32),
        "b_out": s * jax.random.normal(ks[8], (O,), jnp.float32),
    }


def _rel_err(a, b):
    a = jnp.asarray(a, jnp.float32)
    b = jnp.asarray(b, jnp.float32)
    return jnp.linalg.norm((a - b).ravel()) / (jnp.linalg.norm(b.ravel()) + 1e-12)


if __name__ == "__main__":
    # Small-but-aligned shapes: H multiple of 128, O not a tile multiple
    # (exercises O padding), B=4 (sublane padding to 8), L=16 (lane pad to 128).
    B, L, H, O, V = 4, 16, 128, 320, 64

    key = jax.random.PRNGKey(0)
    k_p, k_tok, k_hid, k_enc = jax.random.split(key, 4)

    params = init_params(k_p, H, O, V)
    input_seq = jax.random.randint(k_tok, (1, B), 0, V, dtype=jnp.int32)
    last_hidden = jax.random.normal(k_hid, (1, B, H), jnp.float32)
    encoder_outputs = jax.random.normal(k_enc, (L, B, H), jnp.float32)

    out_r, hid_r, attw_r = reference_step(
        params, input_seq, last_hidden, encoder_outputs)

    # --- f32 weights; tile_o=128 -> the vocab projection runs as a 3-step grid
    prep = prepare_decoder_params(params, tile_o=128,
                                  compute_dtype=jnp.float32)
    enc_prep = prepare_encoder_outputs(encoder_outputs, B,
                                       compute_dtype=jnp.float32)
    out, hid, attw = luong_attn_decoder_step(prep, enc_prep,
                                             input_seq, last_hidden)
    jax.block_until_ready((out, hid, attw))

    assert out.shape == (B, O)
    assert hid.shape == (1, B, H)
    assert attw.shape == (B, 1, L)
    # Tolerances account for MXU matmul precision and the EUP approximate
    # reciprocal in the softmax denominator.
    assert float(_rel_err(hid, hid_r)) < 2e-2
    assert float(_rel_err(attw, attw_r)) < 3e-2
    assert float(_rel_err(out, out_r)) < 3e-2

    # --- bf16 matmul operands (f32 accumulation; recurrent state stays f32):
    # halves the dominant w_out / w_gates HBM streams on v5e/v6e/v7x.
    prep_b = prepare_decoder_params(params, tile_o=128,
                                    compute_dtype=jnp.bfloat16)
    enc_prep_b = prepare_encoder_outputs(encoder_outputs, B,
                                         compute_dtype=jnp.bfloat16)
    out_b, hid_b, attw_b = luong_attn_decoder_step(prep_b, enc_prep_b,
                                                   input_seq, last_hidden)
    jax.block_until_ready((out_b, hid_b, attw_b))
    assert float(_rel_err(hid_b, hid_r)) < 0.15
    assert float(_rel_err(attw_b, attw_r)) < 0.15
    assert float(_rel_err(out_b, out_r)) < 0.15

    print("KERNEL_OK")
</pallas_src>

<mosaic_0001>
module attributes {stable_mosaic.version = 11 : i64} {
  func.func @_rnn_attn_concat_kernel(%arg0: memref<8x128xf32, #tpu.memory_space<vmem>>, %arg1: memref<8x128xf32, #tpu.memory_space<vmem>>, %arg2: memref<8x128x128xf32, #tpu.memory_space<vmem>>, %arg3: memref<128x384xf32, #tpu.memory_space<vmem>>, %arg4: memref<128x384xf32, #tpu.memory_space<vmem>>, %arg5: memref<1x384xf32, #tpu.memory_space<vmem>>, %arg6: memref<1x384xf32, #tpu.memory_space<vmem>>, %arg7: memref<128x128xf32, #tpu.memory_space<vmem>>, %arg8: memref<128x128xf32, #tpu.memory_space<vmem>>, %arg9: memref<1x128xf32, #tpu.memory_space<vmem>>, %arg10: memref<8x128xf32, #tpu.memory_space<vmem>>, %arg11: memref<8x128xf32, #tpu.memory_space<vmem>>, %arg12: memref<8x128xf32, #tpu.memory_space<vmem>>) attributes {dimension_semantics = [], scalar_prefetch = 0 : i64, scratch_operands = 0 : i64, tpu.core_type = #tpu.core_type<tc>} {
    %c0 = arith.constant 0 : index
    %c0_0 = arith.constant 0 : index
    %0 = vector.load %arg1[%c0, %c0_0] : memref<8x128xf32, #tpu.memory_space<vmem>>, vector<8x128xf32>
    %c0_1 = arith.constant 0 : index
    %c0_2 = arith.constant 0 : index
    %1 = vector.load %arg0[%c0_1, %c0_2] : memref<8x128xf32, #tpu.memory_space<vmem>>, vector<8x128xf32>
    %c0_3 = arith.constant 0 : index
    %c0_4 = arith.constant 0 : index
    %2 = vector.load %arg3[%c0_3, %c0_4] : memref<128x384xf32, #tpu.memory_space<vmem>>, vector<128x384xf32>
    %cst = arith.constant dense<0.000000e+00> : vector<8x384xf32>
    %3 = tpu.matmul %1, %2, %cst {dimension_numbers = #tpu.dot_dimension_numbers<[1], [0], [0], [1], [0, 0, 1, 1], [], []>} : vector<8x128xf32>, vector<128x384xf32>, vector<8x384xf32> -> vector<8x384xf32>
    %c0_5 = arith.constant 0 : index
    %c0_6 = arith.constant 0 : index
    %4 = vector.load %arg5[%c0_5, %c0_6] : memref<1x384xf32, #tpu.memory_space<vmem>>, vector<1x384xf32>
    %5 = vector.broadcast %4 : vector<1x384xf32> to vector<8x384xf32>
    %6 = arith.addf %3, %5 : vector<8x384xf32>
    %c0_7 = arith.constant 0 : index
    %c0_8 = arith.constant 0 : index
    %7 = vector.load %arg4[%c0_7, %c0_8] : memref<128x384xf32, #tpu.memory_space<vmem>>, vector<128x384xf32>
    %cst_9 = arith.constant dense<0.000000e+00> : vector<8x384xf32>
    %8 = tpu.matmul %0, %7, %cst_9 {dimension_numbers = #tpu.dot_dimension_numbers<[1], [0], [0], [1], [0, 0, 1, 1], [], []>} : vector<8x128xf32>, vector<128x384xf32>, vector<8x384xf32> -> vector<8x384xf32>
    %c0_10 = arith.constant 0 : index
    %c0_11 = arith.constant 0 : index
    %9 = vector.load %arg6[%c0_10, %c0_11] : memref<1x384xf32, #tpu.memory_space<vmem>>, vector<1x384xf32>
    %10 = vector.broadcast %9 : vector<1x384xf32> to vector<8x384xf32>
    %11 = arith.addf %8, %10 : vector<8x384xf32>
    %12 = vector.extract_strided_slice %6 {offsets = [0, 0], sizes = [8, 128], strides = [1, 1]} : vector<8x384xf32> to vector<8x128xf32>
    %13 = vector.extract_strided_slice %11 {offsets = [0, 0], sizes = [8, 128], strides = [1, 1]} : vector<8x384xf32> to vector<8x128xf32>
    %14 = arith.addf %12, %13 : vector<8x128xf32>
    %15 = arith.negf %14 : vector<8x128xf32>
    %16 = math.exp %15 : vector<8x128xf32>
    %cst_12 = arith.constant 1.000000e+00 : f32
    %17 = vector.broadcast %cst_12 : f32 to vector<8x128xf32>
    %18 = arith.addf %17, %16 : vector<8x128xf32>
    %19 = arith.divf %17, %18 : vector<8x128xf32>
    %20 = vector.extract_strided_slice %6 {offsets = [0, 128], sizes = [8, 128], strides = [1, 1]} : vector<8x384xf32> to vector<8x128xf32>
    %21 = vector.extract_strided_slice %11 {offsets = [0, 128], sizes = [8, 128], strides = [1, 1]} : vector<8x384xf32> to vector<8x128xf32>
    %22 = arith.addf %20, %21 : vector<8x128xf32>
    %23 = arith.negf %22 : vector<8x128xf32>
    %24 = math.exp %23 : vector<8x128xf32>
    %cst_13 = arith.constant 1.000000e+00 : f32
    %25 = vector.broadcast %cst_13 : f32 to vector<8x128xf32>
    %26 = arith.addf %25, %24 : vector<8x128xf32>
    %27 = arith.divf %25, %26 : vector<8x128xf32>
    %28 = vector.extract_strided_slice %6 {offsets = [0, 256], sizes = [8, 128], strides = [1, 1]} : vector<8x384xf32> to vector<8x128xf32>
    %29 = vector.extract_strided_slice %11 {offsets = [0, 256], sizes = [8, 128], strides = [1, 1]} : vector<8x384xf32> to vector<8x128xf32>
    %30 = arith.mulf %19, %29 : vector<8x128xf32>
    %31 = arith.addf %28, %30 : vector<8x128xf32>
    %32 = math.tanh %31 : vector<8x128xf32>
    %cst_14 = arith.constant 1.000000e+00 : f32
    %33 = vector.broadcast %cst_14 : f32 to vector<8x128xf32>
    %34 = arith.subf %33, %27 : vector<8x128xf32>
    %35 = arith.mulf %34, %32 : vector<8x128xf32>
    %36 = arith.mulf %27, %0 : vector<8x128xf32>
    %37 = arith.addf %35, %36 : vector<8x128xf32>
    %c0_15 = arith.constant 0 : index
    %c0_16 = arith.constant 0 : index
    %38 = vector.load %arg10[%c0_15, %c0_16] : memref<8x128xf32, #tpu.memory_space<vmem>>, vector<8x128xf32>
    tpu.vector_store %arg10[%c0_15, %c0_16], %37 {strides = array<i32>} : memref<8x128xf32, #tpu.memory_space<vmem>>, vector<8x128xf32>,
    %c0_17 = arith.constant 0 : index
    %c0_18 = arith.constant 0 : index
    %c0_19 = arith.constant 0 : index
    %39 = vector.load %arg2[%c0_17, %c0_18, %c0_19] : memref<8x128x128xf32, #tpu.memory_space<vmem>>, vector<8x128x128xf32>
    %40 = vector.shape_cast %37 : vector<8x128xf32> to vector<8x1x128xf32>
    "tpu.trace_start"() <{level = 10 : i32, message = "bqh,blh->bql"}> : () -> ()
    %cst_20 = arith.constant dense<0.000000e+00> : vector<8x1x128xf32>
    %41 = tpu.matmul %40, %39, %cst_20 {dimension_numbers = #tpu.dot_dimension_numbers<[2], [2], [1], [1], [0, 0, 0, 1, 1, 1], [0], [0]>} : vector<8x1x128xf32>, vector<8x128x128xf32>, vector<8x1x128xf32> -> vector<8x1x128xf32>
    "tpu.trace_stop"() : () -> ()
    %42 = vector.shape_cast %41 : vector<8x1x128xf32> to vector<8x128xf32>
    %43 = tpu.iota {dimensions = array<i32: 1>} : vector<8x128xi32>
    %c16_i32 = arith.constant 16 : i32
    %44 = vector.broadcast %c16_i32 : i32 to vector<8x128xi32>
    %45 = arith.cmpi slt, %43, %44 : vector<8x128xi32>
    %cst_21 = arith.constant -1.000000e+30 : f32
    %46 = vector.broadcast %cst_21 : f32 to vector<8x128xf32>
    %47 = arith.select %45, %42, %46 : vector<8x128xi1>, vector<8x128xf32>
    %cst_22 = arith.constant dense<0xFF800000> : vector<8xf32>
    %48 = vector.multi_reduction <maximumf>, %47, %cst_22 [1] : vector<8x128xf32> to vector<8xf32>
    %49 = vector.shape_cast %48 : vector<8xf32> to vector<8x1xf32>
    %50 = vector.broadcast %49 : vector<8x1xf32> to vector<8x128xf32>
    %51 = arith.subf %47, %50 : vector<8x128xf32>
    %52 = math.exp %51 : vector<8x128xf32>
    %cst_23 = arith.constant dense<0.000000e+00> : vector<8xf32>
    %53 = vector.multi_reduction <add>, %52, %cst_23 [1] : vector<8x128xf32> to vector<8xf32>
    %54 = vector.shape_cast %53 : vector<8xf32> to vector<8x1xf32>
    %55 = tpu.reciprocal %54 {approx = true} : vector<8x1xf32> -> vector<8x1xf32>
    %56 = vector.broadcast %55 : vector<8x1xf32> to vector<8x128xf32>
    %57 = arith.mulf %52, %56 : vector<8x128xf32>
    %c0_24 = arith.constant 0 : index
    %c0_25 = arith.constant 0 : index
    %58 = vector.load %arg11[%c0_24, %c0_25] : memref<8x128xf32, #tpu.memory_space<vmem>>, vector<8x128xf32>
    tpu.vector_store %arg11[%c0_24, %c0_25], %57 {strides = array<i32>} : memref<8x128xf32, #tpu.memory_space<vmem>>, vector<8x128xf32>,
    %59 = vector.shape_cast %57 : vector<8x128xf32> to vector<8x1x128xf32>
    "tpu.trace_start"() <{level = 10 : i32, message = "bql,blh->bqh"}> : () -> ()
    %cst_26 = arith.constant dense<0.000000e+00> : vector<8x1x128xf32>
    %60 = tpu.matmul %59, %39, %cst_26 {dimension_numbers = #tpu.dot_dimension_numbers<[2], [1], [1], [2], [0, 0, 0, 1, 1, 2], [0], [0]>} : vector<8x1x128xf32>, vector<8x128x128xf32>, vector<8x1x128xf32> -> vector<8x1x128xf32>
    "tpu.trace_stop"() : () -> ()
    %61 = vector.shape_cast %60 : vector<8x1x128xf32> to vector<8x128xf32>
    %c0_27 = arith.constant 0 : index
    %c0_28 = arith.constant 0 : index
    %62 = vector.load %arg7[%c0_27, %c0_28] : memref<128x128xf32, #tpu.memory_space<vmem>>, vector<128x128xf32>
    %cst_29 = arith.constant dense<0.000000e+00> : vector<8x128xf32>
    %63 = tpu.matmul %37, %62, %cst_29 {dimension_numbers = #tpu.dot_dimension_numbers<[1], [0], [0], [1], [0, 0, 1, 1], [], []>} : vector<8x128xf32>, vector<128x128xf32>, vector<8x128xf32> -> vector<8x128xf32>
    %c0_30 = arith.constant 0 : index
    %c0_31 = arith.constant 0 : index
    %64 = vector.load %arg8[%c0_30, %c0_31] : memref<128x128xf32, #tpu.memory_space<vmem>>, vector<128x128xf32>
    %cst_32 = arith.constant dense<0.000000e+00> : vector<8x128xf32>
    %65 = tpu.matmul %61, %64, %cst_32 {dimension_numbers = #tpu.dot_dimension_numbers<[1], [0], [0], [1], [0, 0, 1, 1], [], []>} : vector<8x128xf32>, vector<128x128xf32>, vector<8x128xf32> -> vector<8x128xf32>
    %66 = arith.addf %63, %65 : vector<8x128xf32>
    %c0_33 = arith.constant 0 : index
    %c0_34 = arith.constant 0 : index
    %67 = vector.load %arg9[%c0_33, %c0_34] : memref<1x128xf32, #tpu.memory_space<vmem>>, vector<1x128xf32>
    %68 = vector.broadcast %67 : vector<1x128xf32> to vector<8x128xf32>
    %69 = arith.addf %66, %68 : vector<8x128xf32>
    %70 = math.tanh %69 : vector<8x128xf32>
    %c0_35 = arith.constant 0 : index
    %c0_36 = arith.constant 0 : index
    %71 = vector.load %arg12[%c0_35, %c0_36] : memref<8x128xf32, #tpu.memory_space<vmem>>, vector<8x128xf32>
    tpu.vector_store %arg12[%c0_35, %c0_36], %70 {strides = array<i32>} : memref<8x128xf32, #tpu.memory_space<vmem>>, vector<8x128xf32>,
    return
  }
}

</mosaic_0001>

<llo_original>
// kernel: tpu_custom_call.1
$region0: #{tpu_custom_call.1}
  #allocation0 [shape = 'u32[]', space=smem, size = 0x4, offset = 0x4, fixed_abs, tag = 'smem constant byte address 0x4 - core index']
  #allocation1 [shape = 'u32[144,128]{1,0:T(1,128)}', space=vmem, size = 0x12000, scoped, tag = 'internal scratch']
  %s0 = inlined_call_operand.hbm [shape: f32[8,128], index: 0, kind: input, shape index: {}]
  %s1 = inlined_call_operand.hbm [shape: f32[8,128], index: 1, kind: input, shape index: {}]
  %s2 = inlined_call_operand.hbm [shape: f32[8,128,128], index: 2, kind: input, shape index: {}]
  %s3 = inlined_call_operand.hbm [shape: f32[128,384], index: 3, kind: input, shape index: {}]
  %s4 = inlined_call_operand.hbm [shape: f32[128,384], index: 4, kind: input, shape index: {}]
  %s5 = inlined_call_operand.vmem [shape: f32[1,384], index: 5, kind: input, shape index: {}]
  %s6 = inlined_call_operand.vmem [shape: f32[1,384], index: 6, kind: input, shape index: {}]
  %s7 = inlined_call_operand.hbm [shape: f32[128,128], index: 7, kind: input, shape index: {}]
  %s8 = inlined_call_operand.hbm [shape: f32[128,128], index: 8, kind: input, shape index: {}]
  %s9 = inlined_call_operand.vmem [shape: f32[1,128], index: 9, kind: input, shape index: {}]
  %s10 = inlined_call_operand.hbm [shape: f32[8,128], index: 10, kind: output, shape index: {0}]
  %s11 = inlined_call_operand.hbm [shape: f32[8,128], index: 11, kind: output, shape index: {1}]
  %s12 = inlined_call_operand.hbm [shape: f32[8,128], index: 12, kind: output, shape index: {2}]
  %13 = xla_tuple %s10, %s11, %s12
  %s14 = sld [smem:[#allocation0]]
  $region94: #{tpu_custom_call.1} parent=0
    _
  %s16 = ssub.s32 1, %s14
  %s17 = scalar_select 0, %s16, %s14
  $region1: #{tpu_custom_call.1} parent=0
    #allocation2 [shape = 'u8[4096]{0}', space=vmem, size = 0x1000, scoped, tag = 'input window, operand 0, single buffered']
    #allocation3 [shape = 's32[1]{0}', space=sflag, size = 0x4, scoped, tag = 'scoped memory for tpu_custom_call.1']
    #allocation4 [shape = 's32[1]{0}', space=sflag, size = 0x4, scoped, tag = 'scoped memory for tpu_custom_call.1']
    #allocation5 [shape = 'u8[4096]{0}', space=vmem, size = 0x1000, scoped, tag = 'input window, operand 1, single buffered']
    #allocation6 [shape = 's32[1]{0}', space=sflag, size = 0x4, scoped, tag = 'scoped memory for tpu_custom_call.1']
    #allocation7 [shape = 'u8[524288]{0}', space=vmem, size = 0x80000, scoped, tag = 'input window, operand 2, single buffered']
    #allocation8 [shape = 'u8[196608]{0}', space=vmem, size = 0x30000, scoped, tag = 'input window, operand 3, single buffered']
    #allocation9 [shape = 's32[1]{0}', space=sflag, size = 0x4, scoped, tag = 'scoped memory for tpu_custom_call.1']
    #allocation10 [shape = 'u8[196608]{0}', space=vmem, size = 0x30000, scoped, tag = 'input window, operand 4, single buffered']
    #allocation11 [shape = 'u8[65536]{0}', space=vmem, size = 0x10000, scoped, tag = 'input window, operand 7, single buffered']
    #allocation12 [shape = 's32[1]{0}', space=sflag, size = 0x4, scoped, tag = 'scoped memory for tpu_custom_call.1']
    #allocation13 [shape = 'u8[65536]{0}', space=vmem, size = 0x10000, scoped, tag = 'input window, operand 8, single buffered']
    #allocation14 [shape = 'u8[4096]{0}', space=vmem, size = 0x1000, scoped, tag = 'output window, operand 0, single buffered']
    #allocation15 [shape = 'u8[4096]{0}', space=vmem, size = 0x1000, scoped, tag = 'output window, operand 1, single buffered']
    #allocation16 [shape = 's32[1]{0}', space=sflag, size = 0x4, scoped, tag = 'scoped memory for tpu_custom_call.1']
    #allocation17 [shape = 'u8[4096]{0}', space=vmem, size = 0x1000, scoped, tag = 'output window, operand 2, single buffered']
    %18 = vsyncpa [#allocation3], 0
    %19 = vsyncpa [#allocation6], 0
    %20 = vsyncpa [#allocation9], 0
    %21 = vsyncpa [#allocation12], 0
    %22 = vsyncpa [#allocation4], 0
    %23 = vsyncpa [#allocation16], 0
    // Predicated region
    $region2: #{tpu_custom_call.1} parent=1 // pred_check
      _
    $region3: #{tpu_custom_call.1} parent=1 // pred_check_branch
      %25 = sbr.rel (0) target = $region5
    $region4: #{tpu_custom_call.1} parent=1 // pred_region
      %s27 = ssub.s32 128, 128
      %28 = vsyncadd [#allocation3], %s27
      %s30 = sshll.u32 [#allocation2], 4
      %s31 = int_to_ptr.vmem [resolvable:$true] %s30
      %33 = dma.hbm_to_vmem [thread:$0]  %s0, 128, %s31, [#allocation3]
    $region5: #{tpu_custom_call.1} parent=1 // pred_fallthru
      _
    // Predicated region
    $region6: #{tpu_custom_call.1} parent=1 // pred_check
      _
    $region7: #{tpu_custom_call.1} parent=1 // pred_check_branch
      %35 = sbr.rel (0) target = $region9
    $region8: #{tpu_custom_call.1} parent=1 // pred_region
      %s37 = ssub.s32 128, 128
      %38 = vsyncadd [#allocation6], %s37
      %s40 = sshll.u32 [#allocation5], 4
      %s41 = int_to_ptr.vmem [resolvable:$true] %s40
      %43 = dma.hbm_to_vmem [thread:$0]  %s1, 128, %s41, [#allocation6]
    $region9: #{tpu_custom_call.1} parent=1 // pred_fallthru
      _
    // Predicated region
    $region10: #{tpu_custom_call.1} parent=1 // pred_check
      _
    $region11: #{tpu_custom_call.1} parent=1 // pred_check_branch
      %45 = sbr.rel (0) target = $region13
    $region12: #{tpu_custom_call.1} parent=1 // pred_region
      %s47 = ssub.s32 16384, 16384
      %48 = vsyncadd [#allocation6], %s47
      %s49 = sshll.u32 [#allocation7], 4
      %s50 = int_to_ptr.vmem [resolvable:$true] %s49
      %55 = dma.hbm_to_vmem [thread:$0]  %s2, 16384, %s50, [#allocation6], 128, 128, 8
    $region13: #{tpu_custom_call.1} parent=1 // pred_fallthru
      _
    // Predicated region
    $region14: #{tpu_custom_call.1} parent=1 // pred_check
      _
    $region15: #{tpu_custom_call.1} parent=1 // pred_check_branch
      %57 = sbr.rel (0) target = $region17
    $region16: #{tpu_custom_call.1} parent=1 // pred_region
      %s59 = ssub.s32 6144, 6144
      %60 = vsyncadd [#allocation9], %s59
      %s61 = sshll.u32 [#allocation8], 4
      %s62 = int_to_ptr.vmem [resolvable:$true] %s61
      %67 = dma.hbm_to_vmem [thread:$0]  %s3, 6144, %s62, [#allocation9], 384, 384, 24
    $region17: #{tpu_custom_call.1} parent=1 // pred_fallthru
      _
    // Predicated region
    $region18: #{tpu_custom_call.1} parent=1 // pred_check
      _
    $region19: #{tpu_custom_call.1} parent=1 // pred_check_branch
      %69 = sbr.rel (0) target = $region21
    $region20: #{tpu_custom_call.1} parent=1 // pred_region
      %s71 = ssub.s32 6144, 6144
      %72 = vsyncadd [#allocation9], %s71
      %s73 = sshll.u32 [#allocation10], 4
      %s74 = int_to_ptr.vmem [resolvable:$true] %s73
      %79 = dma.hbm_to_vmem [thread:$0]  %s4, 6144, %s74, [#allocation9], 384, 384, 24
    $region21: #{tpu_custom_call.1} parent=1 // pred_fallthru
      _
    // Predicated region
    $region22: #{tpu_custom_call.1} parent=1 // pred_check
      _
    $region23: #{tpu_custom_call.1} parent=1 // pred_check_branch
      %81 = sbr.rel (0) target = $region25
    $region24: #{tpu_custom_call.1} parent=1 // pred_region
      _
    $region25: #{tpu_custom_call.1} parent=1 // pred_fallthru
      _
    // Predicated region
    $region26: #{tpu_custom_call.1} parent=1 // pred_check
      _
    $region27: #{tpu_custom_call.1} parent=1 // pred_check_branch
      %83 = sbr.rel (0) target = $region29
    $region28: #{tpu_custom_call.1} parent=1 // pred_region
      _
    $region29: #{tpu_custom_call.1} parent=1 // pred_fallthru
      _
    // Predicated region
    $region30: #{tpu_custom_call.1} parent=1 // pred_check
      _
    $region31: #{tpu_custom_call.1} parent=1 // pred_check_branch
      %85 = sbr.rel (0) target = $region33
    $region32: #{tpu_custom_call.1} parent=1 // pred_region
      %s87 = ssub.s32 2048, 2048
      %88 = vsyncadd [#allocation12], %s87
      %s89 = sshll.u32 [#allocation11], 4
      %s90 = int_to_ptr.vmem [resolvable:$true] %s89
      %95 = dma.hbm_to_vmem [thread:$0]  %s7, 2048, %s90, [#allocation12], 128, 128, 8
    $region33: #{tpu_custom_call.1} parent=1 // pred_fallthru
      _
    // Predicated region
    $region34: #{tpu_custom_call.1} parent=1 // pred_check
      _
    $region35: #{tpu_custom_call.1} parent=1 // pred_check_branch
      %97 = sbr.rel (0) target = $region37
    $region36: #{tpu_custom_call.1} parent=1 // pred_region
      %s99 = ssub.s32 2048, 2048
      %100 = vsyncadd [#allocation12], %s99
      %s101 = sshll.u32 [#allocation13], 4
      %s102 = int_to_ptr.vmem [resolvable:$true] %s101
      %107 = dma.hbm_to_vmem [thread:$0]  %s8, 2048, %s102, [#allocation12], 128, 128, 8
    $region37: #{tpu_custom_call.1} parent=1 // pred_fallthru
      _
    // Predicated region
    $region38: #{tpu_custom_call.1} parent=1 // pred_check
      _
    $region39: #{tpu_custom_call.1} parent=1 // pred_check_branch
      %109 = sbr.rel (0) target = $region41
    $region40: #{tpu_custom_call.1} parent=1 // pred_region
      _
    $region41: #{tpu_custom_call.1} parent=1 // pred_fallthru
      _
    // Predicated region
    $region42: #{tpu_custom_call.1} parent=1 // pred_check
      _
    $region43: #{tpu_custom_call.1} parent=1 // pred_check_branch
      %111 = sbr.rel (0) target = $region45
    $region44: #{tpu_custom_call.1} parent=1 // pred_region
      %112 = dma.done [#allocation3], 128
    $region45: #{tpu_custom_call.1} parent=1 // pred_fallthru
      _
    // Predicated region
    $region46: #{tpu_custom_call.1} parent=1 // pred_check
      _
    $region47: #{tpu_custom_call.1} parent=1 // pred_check_branch
      %114 = sbr.rel (0) target = $region49
    $region48: #{tpu_custom_call.1} parent=1 // pred_region
      %115 = dma.done [#allocation6], 128
    $region49: #{tpu_custom_call.1} parent=1 // pred_fallthru
      _
    // Predicated region
    $region50: #{tpu_custom_call.1} parent=1 // pred_check
      _
    $region51: #{tpu_custom_call.1} parent=1 // pred_check_branch
      %117 = sbr.rel (0) target = $region53
    $region52: #{tpu_custom_call.1} parent=1 // pred_region
      %118 = dma.done [#allocation6], 16384
    $region53: #{tpu_custom_call.1} parent=1 // pred_fallthru
      _
    // Predicated region
    $region54: #{tpu_custom_call.1} parent=1 // pred_check
      _
    $region55: #{tpu_custom_call.1} parent=1 // pred_check_branch
      %120 = sbr.rel (0) target = $region57
    $region56: #{tpu_custom_call.1} parent=1 // pred_region
      %121 = dma.done [#allocation9], 6144
    $region57: #{tpu_custom_call.1} parent=1 // pred_fallthru
      _
    // Predicated region
    $region58: #{tpu_custom_call.1} parent=1 // pred_check
      _
    $region59: #{tpu_custom_call.1} parent=1 // pred_check_branch
      %123 = sbr.rel (0) target = $region61
    $region60: #{tpu_custom_call.1} parent=1 // pred_region
      %124 = dma.done [#allocation9], 6144
    $region61: #{tpu_custom_call.1} parent=1 // pred_fallthru
      _
    // Predicated region
    $region62: #{tpu_custom_call.1} parent=1 // pred_check
      _
    $region63: #{tpu_custom_call.1} parent=1 // pred_check_branch
      %126 = sbr.rel (0) target = $region65
    $region64: #{tpu_custom_call.1} parent=1 // pred_region
      %127 = dma.done [#allocation12], 2048
    $region65: #{tpu_custom_call.1} parent=1 // pred_fallthru
      _
    // Predicated region
    $region66: #{tpu_custom_call.1} parent=1 // pred_check
      _
    $region67: #{tpu_custom_call.1} parent=1 // pred_check_branch
      %129 = sbr.rel (0) target = $region69
    $region68: #{tpu_custom_call.1} parent=1 // pred_region
      %130 = dma.done [#allocation12], 2048
    $region69: #{tpu_custom_call.1} parent=1 // pred_fallthru
      _
    %v131 = vld [vmem:[#allocation5] sm:$0xff]
    %v132 = vld [vmem:[#allocation2] sm:$0xff]
    %v133 = vld [vmem:[#allocation8] sm:$0xff]
    %v134 = vld [vmem:[#allocation8 + $0x8] sm:$0xff]
    %v135 = vld [vmem:[#allocation8 + $0x10] sm:$0xff]
    %v136 = vld [vmem:[#allocation8 + $0x18] sm:$0xff]
    %v137 = vld [vmem:[#allocation8 + $0x20] sm:$0xff]
    %v138 = vld [vmem:[#allocation8 + $0x28] sm:$0xff]
    %v139 = vld [vmem:[#allocation8 + $0x30] sm:$0xff]
    %v140 = vld [vmem:[#allocation8 + $0x38] sm:$0xff]
    %v141 = vld [vmem:[#allocation8 + $0x40] sm:$0xff]
    %v142 = vld [vmem:[#allocation8 + $0x48] sm:$0xff]
    %v143 = vld [vmem:[#allocation8 + $0x50] sm:$0xff]
    %v144 = vld [vmem:[#allocation8 + $0x58] sm:$0xff]
    %v145 = vld [vmem:[#allocation8 + $0x60] sm:$0xff]
    %v146 = vld [vmem:[#allocation8 + $0x68] sm:$0xff]
    %v147 = vld [vmem:[#allocation8 + $0x70] sm:$0xff]
    %v148 = vld [vmem:[#allocation8 + $0x78] sm:$0xff]
    %v149 = vld [vmem:[#allocation8 + $0x80] sm:$0xff]
    %v150 = vld [vmem:[#allocation8 + $0x88] sm:$0xff]
    %v151 = vld [vmem:[#allocation8 + $0x90] sm:$0xff]
    %v152 = vld [vmem:[#allocation8 + $0x98] sm:$0xff]
    %v153 = vld [vmem:[#allocation8 + $0xa0] sm:$0xff]
    %v154 = vld [vmem:[#allocation8 + $0xa8] sm:$0xff]
    %v155 = vld [vmem:[#allocation8 + $0xb0] sm:$0xff]
    %v156 = vld [vmem:[#allocation8 + $0xb8] sm:$0xff]
    %v157 = vld [vmem:[#allocation8 + $0xc0] sm:$0xff]
    %v158 = vld [vmem:[#allocation8 + $0xc8] sm:$0xff]
    %v159 = vld [vmem:[#allocation8 + $0xd0] sm:$0xff]
    %v160 = vld [vmem:[#allocation8 + $0xd8] sm:$0xff]
    %v161 = vld [vmem:[#allocation8 + $0xe0] sm:$0xff]
    %v162 = vld [vmem:[#allocation8 + $0xe8] sm:$0xff]
    %v163 = vld [vmem:[#allocation8 + $0xf0] sm:$0xff]
    %v164 = vld [vmem:[#allocation8 + $0xf8] sm:$0xff]
    %v165 = vld [vmem:[#allocation8 + $0x100] sm:$0xff]
    %v166 = vld [vmem:[#allocation8 + $0x108] sm:$0xff]
    %v167 = vld [vmem:[#allocation8 + $0x110] sm:$0xff]
    %v168 = vld [vmem:[#allocation8 + $0x118] sm:$0xff]
    %v169 = vld [vmem:[#allocation8 + $0x120] sm:$0xff]
    %v170 = vld [vmem:[#allocation8 + $0x128] sm:$0xff]
    %v171 = vld [vmem:[#allocation8 + $0x130] sm:$0xff]
    %v172 = vld [vmem:[#allocation8 + $0x138] sm:$0xff]
    %v173 = vld [vmem:[#allocation8 + $0x140] sm:$0xff]
    %v174 = vld [vmem:[#allocation8 + $0x148] sm:$0xff]
    %v175 = vld [vmem:[#allocation8 + $0x150] sm:$0xff]
    %v176 = vld [vmem:[#allocation8 + $0x158] sm:$0xff]
    %v177 = vld [vmem:[#allocation8 + $0x160] sm:$0xff]
    %v178 = vld [vmem:[#allocation8 + $0x168] sm:$0xff]
    %v179 = vld [vmem:[#allocation8 + $0x170] sm:$0xff]
    %v180 = vld [vmem:[#allocation8 + $0x178] sm:$0xff]
    %v181 = vld [vmem:[%s5] sm:$0x7]
    %v183 = vlaneseq
    %v184 = vshrl.u32 %v183, 7
    %v185 = vsub.s32 0, %v184
    %v186 = vrot.slane %v181, %v185
    %v187 = vlaneseq
    %v188 = vshrl.u32 %v187, 7
    %v189 = vsub.s32 1, %v188
    %v190 = vrot.slane %v181, %v189
    %v191 = vlaneseq
    %v192 = vshrl.u32 %v191, 7
    %v193 = vsub.s32 2, %v192
    %v194 = vrot.slane %v181, %v193
    %198 = vmatprep.subr.mxu0 %v134
    %199 = vmatpush1.msra.mxu0 %v133
    %200 = vmatprep.subr.mxu0 %v137
    %201 = vmatpush1.msra.mxu0 %v136
    %202 = vmatprep.subr.mxu0 %v140
    %203 = vmatpush1.msra.mxu0 %v139
    %204 = vmatprep.subr.mxu0 %v143
    %205 = vmatpush1.msra.mxu0 %v142
    %206 = vmatprep.subr.mxu0 %v146
    %207 = vmatpush1.msra.mxu0 %v145
    %208 = vmatprep.subr.mxu0 %v149
    %209 = vmatpush1.msra.mxu0 %v148
    %210 = vmatprep.subr.mxu0 %v152
    %211 = vmatpush1.msra.mxu0 %v151
    %212 = vmatprep.subr.mxu0 %v155
    %213 = vmatpush1.msra.mxu0 %v154
    %214 = vmatprep.subr.mxu0 %v158
    %215 = vmatpush1.msra.mxu0 %v157
    %216 = vmatprep.subr.mxu0 %v161
    %217 = vmatpush1.msra.mxu0 %v160
    %218 = vmatprep.subr.mxu0 %v164
    %219 = vmatpush1.msra.mxu0 %v163
    %220 = vmatprep.subr.mxu0 %v167
    %221 = vmatpush1.msra.mxu0 %v166
    %222 = vmatprep.subr.mxu0 %v170
    %223 = vmatpush1.msra.mxu0 %v169
    %224 = vmatprep.subr.mxu0 %v173
    %225 = vmatpush1.msra.mxu0 %v172
    %226 = vmatprep.subr.mxu0 %v176
    %227 = vmatpush1.msra.mxu0 %v175
    %228 = vmatprep.subr.mxu0 %v179
    %229 = vmatpush1.msra.mxu0 %v178
    %230 = vmatprep.subr.mxu0 0.0
    %231 = vmatpush1.msra.mxu0 0.0
    %232 = vmatprep.subr.mxu0 0.0
    %233 = vmatpush1.msra.mxu0 0.0
    %234 = vmatprep.subr.mxu0 0.0
    %235 = vmatpush1.msra.mxu0 0.0
    %236 = vmatprep.subr.mxu0 0.0
    %237 = vmatpush1.msra.mxu0 0.0
    %238 = vmatprep.subr.mxu0 0.0
    %239 = vmatpush1.msra.mxu0 0.0
    %240 = vmatprep.subr.mxu0 0.0
    %241 = vmatpush1.msra.mxu0 0.0
    %242 = vmatprep.subr.mxu0 0.0
    %243 = vmatpush1.msra.mxu0 0.0
    %244 = vmatprep.subr.mxu0 0.0
    %245 = vmatpush1.msra.mxu0 0.0
    %246 = vmatprep.subr.mxu0 0.0
    %247 = vmatpush1.msra.mxu0 0.0
    %248 = vmatprep.subr.mxu0 0.0
    %249 = vmatpush1.msra.mxu0 0.0
    %250 = vmatprep.subr.mxu0 0.0
    %251 = vmatpush1.msra.mxu0 0.0
    %252 = vmatprep.subr.mxu0 0.0
    %253 = vmatpush1.msra.mxu0 0.0
    %254 = vmatprep.subr.mxu0 0.0
    %255 = vmatpush1.msra.mxu0 0.0
    %256 = vmatprep.subr.mxu0 0.0
    %257 = vmatpush1.msra.mxu0 0.0
    %258 = vmatprep.subr.mxu0 0.0
    %259 = vmatpush1.msra.mxu0 0.0
    %260 = vmatprep.subr.mxu0 0.0
    %261 = vmatpush1.msra.mxu0 0.0
    %262 = vmatprep.mubr.f32.mxu0 0.0
    %263 = vmatmul.mubr.f32.gmra.mrb[0].mxu0 %v132
    %v264 = vpop.f32.mrb[0].mxu0
    %v265 = vadd.f32 %v186, %v264
    %v266 = vpop.f32.mrb[0].mxu0
    %v267 = vadd.f32 %v190, %v266
    %268 = vdwg.mxu0
    %269 = vmatprep.subr.mxu0 0.0
    %270 = vmatpush1.msra.mxu0 %v135
    %271 = vmatprep.subr.mxu0 0.0
    %272 = vmatpush1.msra.mxu0 %v138
    %273 = vmatprep.subr.mxu0 0.0
    %274 = vmatpush1.msra.mxu0 %v141
    %275 = vmatprep.subr.mxu0 0.0
    %276 = vmatpush1.msra.mxu0 %v144
    %277 = vmatprep.subr.mxu0 0.0
    %278 = vmatpush1.msra.mxu0 %v147
    %279 = vmatprep.subr.mxu0 0.0
    %280 = vmatpush1.msra.mxu0 %v150
    %281 = vmatprep.subr.mxu0 0.0
    %282 = vmatpush1.msra.mxu0 %v153
    %283 = vmatprep.subr.mxu0 0.0
    %284 = vmatpush1.msra.mxu0 %v156
    %285 = vmatprep.subr.mxu0 0.0
    %286 = vmatpush1.msra.mxu0 %v159
    %287 = vmatprep.subr.mxu0 0.0
    %288 = vmatpush1.msra.mxu0 %v162
    %289 = vmatprep.subr.mxu0 0.0
    %290 = vmatpush1.msra.mxu0 %v165
    %291 = vmatprep.subr.mxu0 0.0
    %292 = vmatpush1.msra.mxu0 %v168
    %293 = vmatprep.subr.mxu0 0.0
    %294 = vmatpush1.msra.mxu0 %v171
    %295 = vmatprep.subr.mxu0 0.0
    %296 = vmatpush1.msra.mxu0 %v174
    %297 = vmatprep.subr.mxu0 0.0
    %298 = vmatpush1.msra.mxu0 %v177
    %299 = vmatprep.subr.mxu0 0.0
    %300 = vmatpush1.msra.mxu0 %v180
    %301 = vmatprep.subr.mxu0 0.0
    %302 = vmatpush1.msra.mxu0 0.0
    %303 = vmatprep.subr.mxu0 0.0
    %304 = vmatpush1.msra.mxu0 0.0
    %305 = vmatprep.subr.mxu0 0.0
    %306 = vmatpush1.msra.mxu0 0.0
    %307 = vmatprep.subr.mxu0 0.0
    %308 = vmatpush1.msra.mxu0 0.0
    %309 = vmatprep.subr.mxu0 0.0
    %310 = vmatpush1.msra.mxu0 0.0
    %311 = vmatprep.subr.mxu0 0.0
    %312 = vmatpush1.msra.mxu0 0.0
    %313 = vmatprep.subr.mxu0 0.0
    %314 = vmatpush1.msra.mxu0 0.0
    %315 = vmatprep.subr.mxu0 0.0
    %316 = vmatpush1.msra.mxu0 0.0
    %317 = vmatprep.subr.mxu0 0.0
    %318 = vmatpush1.msra.mxu0 0.0
    %319 = vmatprep.subr.mxu0 0.0
    %320 = vmatpush1.msra.mxu0 0.0
    %321 = vmatprep.subr.mxu0 0.0
    %322 = vmatpush1.msra.mxu0 0.0
    %323 = vmatprep.subr.mxu0 0.0
    %324 = vmatpush1.msra.mxu0 0.0
    %325 = vmatprep.subr.mxu0 0.0
    %326 = vmatpush1.msra.mxu0 0.0
    %327 = vmatprep.subr.mxu0 0.0
    %328 = vmatpush1.msra.mxu0 0.0
    %329 = vmatprep.subr.mxu0 0.0
    %330 = vmatpush1.msra.mxu0 0.0
    %331 = vmatprep.subr.mxu0 0.0
    %332 = vmatpush1.msra.mxu0 0.0
    %333 = vmatprep.mubr.f32.mxu0 0.0
    %334 = vmatmul.mubr.f32.gmra.mrb[0].mxu0 %v132
    %v335 = vpop.f32.mrb[0].mxu0
    %v336 = vadd.f32 %v194, %v335
    %v337 = vpop.f32.mrb[0].mxu0
    %338 = vdwg.mxu0
    %v339 = vld [vmem:[#allocation10] sm:$0xff]
    %v340 = vld [vmem:[#allocation10 + $0x8] sm:$0xff]
    %v341 = vld [vmem:[#allocation10 + $0x10] sm:$0xff]
    %v342 = vld [vmem:[#allocation10 + $0x18] sm:$0xff]
    %v343 = vld [vmem:[#allocation10 + $0x20] sm:$0xff]
    %v344 = vld [vmem:[#allocation10 + $0x28] sm:$0xff]
    %v345 = vld [vmem:[#allocation10 + $0x30] sm:$0xff]
    %v346 = vld [vmem:[#allocation10 + $0x38] sm:$0xff]
    %v347 = vld [vmem:[#allocation10 + $0x40] sm:$0xff]
    %v348 = vld [vmem:[#allocation10 + $0x48] sm:$0xff]
    %v349 = vld [vmem:[#allocation10 + $0x50] sm:$0xff]
    %v350 = vld [vmem:[#allocation10 + $0x58] sm:$0xff]
    %v351 = vld [vmem:[#allocation10 + $0x60] sm:$0xff]
    %v352 = vld [vmem:[#allocation10 + $0x68] sm:$0xff]
    %v353 = vld [vmem:[#allocation10 + $0x70] sm:$0xff]
    %v354 = vld [vmem:[#allocation10 + $0x78] sm:$0xff]
    %v355 = vld [vmem:[#allocation10 + $0x80] sm:$0xff]
    %v356 = vld [vmem:[#allocation10 + $0x88] sm:$0xff]
    %v357 = vld [vmem:[#allocation10 + $0x90] sm:$0xff]
    %v358 = vld [vmem:[#allocation10 + $0x98] sm:$0xff]
    %v359 = vld [vmem:[#allocation10 + $0xa0] sm:$0xff]
    %v360 = vld [vmem:[#allocation10 + $0xa8] sm:$0xff]
    %v361 = vld [vmem:[#allocation10 + $0xb0] sm:$0xff]
    %v362 = vld [vmem:[#allocation10 + $0xb8] sm:$0xff]
    %v363 = vld [vmem:[#allocation10 + $0xc0] sm:$0xff]
    %v364 = vld [vmem:[#allocation10 + $0xc8] sm:$0xff]
    %v365 = vld [vmem:[#allocation10 + $0xd0] sm:$0xff]
    %v366 = vld [vmem:[#allocation10 + $0xd8] sm:$0xff]
    %v367 = vld [vmem:[#allocation10 + $0xe0] sm:$0xff]
    %v368 = vld [vmem:[#allocation10 + $0xe8] sm:$0xff]
    %v369 = vld [vmem:[#allocation10 + $0xf0] sm:$0xff]
    %v370 = vld [vmem:[#allocation10 + $0xf8] sm:$0xff]
    %v371 = vld [vmem:[#allocation10 + $0x100] sm:$0xff]
    %v372 = vld [vmem:[#allocation10 + $0x108] sm:$0xff]
    %v373 = vld [vmem:[#allocation10 + $0x110] sm:$0xff]
    %v374 = vld [vmem:[#allocation10 + $0x118] sm:$0xff]
    %v375 = vld [vmem:[#allocation10 + $0x120] sm:$0xff]
    %v376 = vld [vmem:[#allocation10 + $0x128] sm:$0xff]
    %v377 = vld [vmem:[#allocation10 + $0x130] sm:$0xff]
    %v378 = vld [vmem:[#allocation10 + $0x138] sm:$0xff]
    %v379 = vld [vmem:[#allocation10 + $0x140] sm:$0xff]
    %v380 = vld [vmem:[#allocation10 + $0x148] sm:$0xff]
    %v381 = vld [vmem:[#allocation10 + $0x150] sm:$0xff]
    %v382 = vld [vmem:[#allocation10 + $0x158] sm:$0xff]
    %v383 = vld [vmem:[#allocation10 + $0x160] sm:$0xff]
    %v384 = vld [vmem:[#allocation10 + $0x168] sm:$0xff]
    %v385 = vld [vmem:[#allocation10 + $0x170] sm:$0xff]
    %v386 = vld [vmem:[#allocation10 + $0x178] sm:$0xff]
    %v387 = vld [vmem:[%s6] sm:$0x7]
    %v389 = vlaneseq
    %v390 = vshrl.u32 %v389, 7
    %v391 = vsub.s32 0, %v390
    %v392 = vrot.slane %v387, %v391
    %v393 = vlaneseq
    %v394 = vshrl.u32 %v393, 7
    %v395 = vsub.s32 1, %v394
    %v396 = vrot.slane %v387, %v395
    %v397 = vlaneseq
    %v398 = vshrl.u32 %v397, 7
    %v399 = vsub.s32 2, %v398
    %v400 = vrot.slane %v387, %v399
    %404 = vmatprep.subr.mxu0 %v340
    %405 = vmatpush1.msra.mxu0 %v339
    %406 = vmatprep.subr.mxu0 %v343
    %407 = vmatpush1.msra.mxu0 %v342
    %408 = vmatprep.subr.mxu0 %v346
    %409 = vmatpush1.msra.mxu0 %v345
    %410 = vmatprep.subr.mxu0 %v349
    %411 = vmatpush1.msra.mxu0 %v348
    %412 = vmatprep.subr.mxu0 %v352
    %413 = vmatpush1.msra.mxu0 %v351
    %414 = vmatprep.subr.mxu0 %v355
    %415 = vmatpush1.msra.mxu0 %v354
    %416 = vmatprep.subr.mxu0 %v358
    %417 = vmatpush1.msra.mxu0 %v357
    %418 = vmatprep.subr.mxu0 %v361
    %419 = vmatpush1.msra.mxu0 %v360
    %420 = vmatprep.subr.mxu0 %v364
    %421 = vmatpush1.msra.mxu0 %v363
    %422 = vmatprep.subr.mxu0 %v367
    %423 = vmatpush1.msra.mxu0 %v366
    %424 = vmatprep.subr.mxu0 %v370
    %425 = vmatpush1.msra.mxu0 %v369
    %426 = vmatprep.subr.mxu0 %v373
    %427 = vmatpush1.msra.mxu0 %v372
    %428 = vmatprep.subr.mxu0 %v376
    %429 = vmatpush1.msra.mxu0 %v375
    %430 = vmatprep.subr.mxu0 %v379
    %431 = vmatpush1.msra.mxu0 %v378
    %432 = vmatprep.subr.mxu0 %v382
    %433 = vmatpush1.msra.mxu0 %v381
    %434 = vmatprep.subr.mxu0 %v385
    %435 = vmatpush1.msra.mxu0 %v384
    %436 = vmatprep.subr.mxu0 0.0
    %437 = vmatpush1.msra.mxu0 0.0
    %438 = vmatprep.subr.mxu0 0.0
    %439 = vmatpush1.msra.mxu0 0.0
    %440 = vmatprep.subr.mxu0 0.0
    %441 = vmatpush1.msra.mxu0 0.0
    %442 = vmatprep.subr.mxu0 0.0
    %443 = vmatpush1.msra.mxu0 0.0
    %444 = vmatprep.subr.mxu0 0.0
    %445 = vmatpush1.msra.mxu0 0.0
    %446 = vmatprep.subr.mxu0 0.0
    %447 = vmatpush1.msra.mxu0 0.0
    %448 = vmatprep.subr.mxu0 0.0
    %449 = vmatpush1.msra.mxu0 0.0
    %450 = vmatprep.subr.mxu0 0.0
    %451 = vmatpush1.msra.mxu0 0.0
    %452 = vmatprep.subr.mxu0 0.0
    %453 = vmatpush1.msra.mxu0 0.0
    %454 = vmatprep.subr.mxu0 0.0
    %455 = vmatpush1.msra.mxu0 0.0
    %456 = vmatprep.subr.mxu0 0.0
    %457 = vmatpush1.msra.mxu0 0.0
    %458 = vmatprep.subr.mxu0 0.0
    %459 = vmatpush1.msra.mxu0 0.0
    %460 = vmatprep.subr.mxu0 0.0
    %461 = vmatpush1.msra.mxu0 0.0
    %462 = vmatprep.subr.mxu0 0.0
    %463 = vmatpush1.msra.mxu0 0.0
    %464 = vmatprep.subr.mxu0 0.0
    %465 = vmatpush1.msra.mxu0 0.0
    %466 = vmatprep.subr.mxu0 0.0
    %467 = vmatpush1.msra.mxu0 0.0
    %468 = vmatprep.mubr.f32.mxu0 0.0
    %469 = vmatmul.mubr.f32.gmra.mrb[0].mxu0 %v131
    %v470 = vpop.f32.mrb[0].mxu0
    %v471 = vadd.f32 %v392, %v470
    %v472 = vpop.f32.mrb[0].mxu0
    %v473 = vadd.f32 %v396, %v472
    %474 = vdwg.mxu0
    %475 = vmatprep.subr.mxu0 0.0
    %476 = vmatpush1.msra.mxu0 %v341
    %477 = vmatprep.subr.mxu0 0.0
    %478 = vmatpush1.msra.mxu0 %v344
    %479 = vmatprep.subr.mxu0 0.0
    %480 = vmatpush1.msra.mxu0 %v347
    %481 = vmatprep.subr.mxu0 0.0
    %482 = vmatpush1.msra.mxu0 %v350
    %483 = vmatprep.subr.mxu0 0.0
    %484 = vmatpush1.msra.mxu0 %v353
    %485 = vmatprep.subr.mxu0 0.0
    %486 = vmatpush1.msra.mxu0 %v356
    %487 = vmatprep.subr.mxu0 0.0
    %488 = vmatpush1.msra.mxu0 %v359
    %489 = vmatprep.subr.mxu0 0.0
    %490 = vmatpush1.msra.mxu0 %v362
    %491 = vmatprep.subr.mxu0 0.0
    %492 = vmatpush1.msra.mxu0 %v365
    %493 = vmatprep.subr.mxu0 0.0
    %494 = vmatpush1.msra.mxu0 %v368
    %495 = vmatprep.subr.mxu0 0.0
    %496 = vmatpush1.msra.mxu0 %v371
    %497 = vmatprep.subr.mxu0 0.0
    %498 = vmatpush1.msra.mxu0 %v374
    %499 = vmatprep.subr.mxu0 0.0
    %500 = vmatpush1.msra.mxu0 %v377
    %501 = vmatprep.subr.mxu0 0.0
    %502 = vmatpush1.msra.mxu0 %v380
    %503 = vmatprep.subr.mxu0 0.0
    %504 = vmatpush1.msra.mxu0 %v383
    %505 = vmatprep.subr.mxu0 0.0
    %506 = vmatpush1.msra.mxu0 %v386
    %507 = vmatprep.subr.mxu0 0.0
    %508 = vmatpush1.msra.mxu0 0.0
    %509 = vmatprep.subr.mxu0 0.0
    %510 = vmatpush1.msra.mxu0 0.0
    %511 = vmatprep.subr.mxu0 0.0
    %512 = vmatpush1.msra.mxu0 0.0
    %513 = vmatprep.subr.mxu0 0.0
    %514 = vmatpush1.msra.mxu0 0.0
    %515 = vmatprep.subr.mxu0 0.0
    %516 = vmatpush1.msra.mxu0 0.0
    %517 = vmatprep.subr.mxu0 0.0
    %518 = vmatpush1.msra.mxu0 0.0
    %519 = vmatprep.subr.mxu0 0.0
    %520 = vmatpush1.msra.mxu0 0.0
    %521 = vmatprep.subr.mxu0 0.0
    %522 = vmatpush1.msra.mxu0 0.0
    %523 = vmatprep.subr.mxu0 0.0
    %524 = vmatpush1.msra.mxu0 0.0
    %525 = vmatprep.subr.mxu0 0.0
    %526 = vmatpush1.msra.mxu0 0.0
    %527 = vmatprep.subr.mxu0 0.0
    %528 = vmatpush1.msra.mxu0 0.0
    %529 = vmatprep.subr.mxu0 0.0
    %530 = vmatpush1.msra.mxu0 0.0
    %531 = vmatprep.subr.mxu0 0.0
    %532 = vmatpush1.msra.mxu0 0.0
    %533 = vmatprep.subr.mxu0 0.0
    %534 = vmatpush1.msra.mxu0 0.0
    %535 = vmatprep.subr.mxu0 0.0
    %536 = vmatpush1.msra.mxu0 0.0
    %537 = vmatprep.subr.mxu0 0.0
    %538 = vmatpush1.msra.mxu0 0.0
    %539 = vmatprep.mubr.f32.mxu0 0.0
    %540 = vmatmul.mubr.f32.gmra.mrb[0].mxu0 %v131
    %v541 = vpop.f32.mrb[0].mxu0
    %v542 = vadd.f32 %v400, %v541
    %v543 = vpop.f32.mrb[0].mxu0
    %544 = vdwg.mxu0
    %v545 = vadd.f32 %v265, %v471
    %v546 = vxor.u32 %v545, 2147483648
    %v547 = vmul.f32 %v546, 1.442695
    %v548 = vpow.pop %v547
    %v549 = vadd.f32 %v548, 1.0
    %v550 = vrcp.pop %v549
    %v551 = vmul.f32 1.0, %v550
    %v552 = vadd.f32 %v267, %v473
    %v553 = vxor.u32 %v552, 2147483648
    %v554 = vmul.f32 %v553, 1.442695
    %v555 = vpow.pop %v554
    %v556 = vadd.f32 %v555, 1.0
    %v557 = vrcp.pop %v556
    %v558 = vmul.f32 1.0, %v557
    %v559 = vmul.f32 %v551, %v542
    %v560 = vadd.f32 %v336, %v559
    %v561 = vtanh.pop %v560
    %v562 = vsub.f32 1.0, %v558
    %v563 = vmul.f32 %v562, %v561
    %v564 = vmul.f32 %v558, %v131
    %v565 = vadd.f32 %v563, %v564
    %566 = vst [vmem:[#allocation14] sm:$0xff] %v565
    %v567 = vld [vmem:[#allocation7] sm:$0xff]
    %v568 = vld [vmem:[#allocation7 + $0x8] sm:$0xff]
    %v569 = vld [vmem:[#allocation7 + $0x10] sm:$0xff]
    %v570 = vld [vmem:[#allocation7 + $0x18] sm:$0xff]
    %v571 = vld [vmem:[#allocation7 + $0x20] sm:$0xff]
    %v572 = vld [vmem:[#allocation7 + $0x28] sm:$0xff]
    %v573 = vld [vmem:[#allocation7 + $0x30] sm:$0xff]
    %v574 = vld [vmem:[#allocation7 + $0x38] sm:$0xff]
    %v575 = vld [vmem:[#allocation7 + $0x40] sm:$0xff]
    %v576 = vld [vmem:[#allocation7 + $0x48] sm:$0xff]
    %v577 = vld [vmem:[#allocation7 + $0x50] sm:$0xff]
    %v578 = vld [vmem:[#allocation7 + $0x58] sm:$0xff]
    %v579 = vld [vmem:[#allocation7 + $0x60] sm:$0xff]
    %v580 = vld [vmem:[#allocation7 + $0x68] sm:$0xff]
    %v581 = vld [vmem:[#allocation7 + $0x70] sm:$0xff]
    %v582 = vld [vmem:[#allocation7 + $0x78] sm:$0xff]
    %v583 = vld [vmem:[#allocation7 + $0x80] sm:$0xff]
    %v584 = vld [vmem:[#allocation7 + $0x88] sm:$0xff]
    %v585 = vld [vmem:[#allocation7 + $0x90] sm:$0xff]
    %v586 = vld [vmem:[#allocation7 + $0x98] sm:$0xff]
    %v587 = vld [vmem:[#allocation7 + $0xa0] sm:$0xff]
    %v588 = vld [vmem:[#allocation7 + $0xa8] sm:$0xff]
    %v589 = vld [vmem:[#allocation7 + $0xb0] sm:$0xff]
    %v590 = vld [vmem:[#allocation7 + $0xb8] sm:$0xff]
    %v591 = vld [vmem:[#allocation7 + $0xc0] sm:$0xff]
    %v592 = vld [vmem:[#allocation7 + $0xc8] sm:$0xff]
    %v593 = vld [vmem:[#allocation7 + $0xd0] sm:$0xff]
    %v594 = vld [vmem:[#allocation7 + $0xd8] sm:$0xff]
    %v595 = vld [vmem:[#allocation7 + $0xe0] sm:$0xff]
    %v596 = vld [vmem:[#allocation7 + $0xe8] sm:$0xff]
    %v597 = vld [vmem:[#allocation7 + $0xf0] sm:$0xff]
    %v598 = vld [vmem:[#allocation7 + $0xf8] sm:$0xff]
    %v599 = vld [vmem:[#allocation7 + $0x100] sm:$0xff]
    %v600 = vld [vmem:[#allocation7 + $0x108] sm:$0xff]
    %v601 = vld [vmem:[#allocation7 + $0x110] sm:$0xff]
    %v602 = vld [vmem:[#allocation7 + $0x118] sm:$0xff]
    %v603 = vld [vmem:[#allocation7 + $0x120] sm:$0xff]
    %v604 = vld [vmem:[#allocation7 + $0x128] sm:$0xff]
    %v605 = vld [vmem:[#allocation7 + $0x130] sm:$0xff]
    %v606 = vld [vmem:[#allocation7 + $0x138] sm:$0xff]
    %v607 = vld [vmem:[#allocation7 + $0x140] sm:$0xff]
    %v608 = vld [vmem:[#allocation7 + $0x148] sm:$0xff]
    %v609 = vld [vmem:[#allocation7 + $0x150] sm:$0xff]
    %v610 = vld [vmem:[#allocation7 + $0x158] sm:$0xff]
    %v611 = vld [vmem:[#allocation7 + $0x160] sm:$0xff]
    %v612 = vld [vmem:[#allocation7 + $0x168] sm:$0xff]
    %v613 = vld [vmem:[#allocation7 + $0x170] sm:$0xff]
    %v614 = vld [vmem:[#allocation7 + $0x178] sm:$0xff]
    %v615 = vld [vmem:[#allocation7 + $0x180] sm:$0xff]
    %v616 = vld [vmem:[#allocation7 + $0x188] sm:$0xff]
    %v617 = vld [vmem:[#allocation7 + $0x190] sm:$0xff]
    %v618 = vld [vmem:[#allocation7 + $0x198] sm:$0xff]
    %v619 = vld [vmem:[#allocation7 + $0x1a0] sm:$0xff]
    %v620 = vld [vmem:[#allocation7 + $0x1a8] sm:$0xff]
    %v621 = vld [vmem:[#allocation7 + $0x1b0] sm:$0xff]
    %v622 = vld [vmem:[#allocation7 + $0x1b8] sm:$0xff]
    %v623 = vld [vmem:[#allocation7 + $0x1c0] sm:$0xff]
    %v624 = vld [vmem:[#allocation7 + $0x1c8] sm:$0xff]
    %v625 = vld [vmem:[#allocation7 + $0x1d0] sm:$0xff]
    %v626 = vld [vmem:[#allocation7 + $0x1d8] sm:$0xff]
    %v627 = vld [vmem:[#allocation7 + $0x1e0] sm:$0xff]
    %v628 = vld [vmem:[#allocation7 + $0x1e8] sm:$0xff]
    %v629 = vld [vmem:[#allocation7 + $0x1f0] sm:$0xff]
    %v630 = vld [vmem:[#allocation7 + $0x1f8] sm:$0xff]
    %v631 = vld [vmem:[#allocation7 + $0x200] sm:$0xff]
    %v632 = vld [vmem:[#allocation7 + $0x208] sm:$0xff]
    %v633 = vld [vmem:[#allocation7 + $0x210] sm:$0xff]
    %v634 = vld [vmem:[#allocation7 + $0x218] sm:$0xff]
    %v635 = vld [vmem:[#allocation7 + $0x220] sm:$0xff]
    %v636 = vld [vmem:[#allocation7 + $0x228] sm:$0xff]
    %v637 = vld [vmem:[#allocation7 + $0x230] sm:$0xff]
    %v638 = vld [vmem:[#allocation7 + $0x238] sm:$0xff]
    %v639 = vld [vmem:[#allocation7 + $0x240] sm:$0xff]
    %v640 = vld [vmem:[#allocation7 + $0x248] sm:$0xff]
    %v641 = vld [vmem:[#allocation7 + $0x250] sm:$0xff]
    %v642 = vld [vmem:[#allocation7 + $0x258] sm:$0xff]
    %v643 = vld [vmem:[#allocation7 + $0x260] sm:$0xff]
    %v644 = vld [vmem:[#allocation7 + $0x268] sm:$0xff]
    %v645 = vld [vmem:[#allocation7 + $0x270] sm:$0xff]
    %v646 = vld [vmem:[#allocation7 + $0x278] sm:$0xff]
    %v647 = vld [vmem:[#allocation7 + $0x280] sm:$0xff]
    %v648 = vld [vmem:[#allocation7 + $0x288] sm:$0xff]
    %v649 = vld [vmem:[#allocation7 + $0x290] sm:$0xff]
    %v650 = vld [vmem:[#allocation7 + $0x298] sm:$0xff]
    %v651 = vld [vmem:[#allocation7 + $0x2a0] sm:$0xff]
    %v652 = vld [vmem:[#allocation7 + $0x2a8] sm:$0xff]
    %v653 = vld [vmem:[#allocation7 + $0x2b0] sm:$0xff]
    %v654 = vld [vmem:[#allocation7 + $0x2b8] sm:$0xff]
    %v655 = vld [vmem:[#allocation7 + $0x2c0] sm:$0xff]
    %v656 = vld [vmem:[#allocation7 + $0x2c8] sm:$0xff]
    %v657 = vld [vmem:[#allocation7 + $0x2d0] sm:$0xff]
    %v658 = vld [vmem:[#allocation7 + $0x2d8] sm:$0xff]
    %v659 = vld [vmem:[#allocation7 + $0x2e0] sm:$0xff]
    %v660 = vld [vmem:[#allocation7 + $0x2e8] sm:$0xff]
    %v661 = vld [vmem:[#allocation7 + $0x2f0] sm:$0xff]
    %v662 = vld [vmem:[#allocation7 + $0x2f8] sm:$0xff]
    %v663 = vld [vmem:[#allocation7 + $0x300] sm:$0xff]
    %v664 = vld [vmem:[#allocation7 + $0x308] sm:$0xff]
    %v665 = vld [vmem:[#allocation7 + $0x310] sm:$0xff]
    %v666 = vld [vmem:[#allocation7 + $0x318] sm:$0xff]
    %v667 = vld [vmem:[#allocation7 + $0x320] sm:$0xff]
    %v668 = vld [vmem:[#allocation7 + $0x328] sm:$0xff]
    %v669 = vld [vmem:[#allocation7 + $0x330] sm:$0xff]
    %v670 = vld [vmem:[#allocation7 + $0x338] sm:$0xff]
    %v671 = vld [vmem:[#allocation7 + $0x340] sm:$0xff]
    %v672 = vld [vmem:[#allocation7 + $0x348] sm:$0xff]
    %v673 = vld [vmem:[#allocation7 + $0x350] sm:$0xff]
    %v674 = vld [vmem:[#allocation7 + $0x358] sm:$0xff]
    %v675 = vld [vmem:[#allocation7 + $0x360] sm:$0xff]
    %v676 = vld [vmem:[#allocation7 + $0x368] sm:$0xff]
    %v677 = vld [vmem:[#allocation7 + $0x370] sm:$0xff]
    %v678 = vld [vmem:[#allocation7 + $0x378] sm:$0xff]
    %v679 = vld [vmem:[#allocation7 + $0x380] sm:$0xff]
    %v680 = vld [vmem:[#allocation7 + $0x388] sm:$0xff]
    %v681 = vld [vmem:[#allocation7 + $0x390] sm:$0xff]
    %v682 = vld [vmem:[#allocation7 + $0x398] sm:$0xff]
    %v683 = vld [vmem:[#allocation7 + $0x3a0] sm:$0xff]
    %v684 = vld [vmem:[#allocation7 + $0x3a8] sm:$0xff]
    %v685 = vld [vmem:[#allocation7 + $0x3b0] sm:$0xff]
    %v686 = vld [vmem:[#allocation7 + $0x3b8] sm:$0xff]
    %v687 = vld [vmem:[#allocation7 + $0x3c0] sm:$0xff]
    %v688 = vld [vmem:[#allocation7 + $0x3c8] sm:$0xff]
    %v689 = vld [vmem:[#allocation7 + $0x3d0] sm:$0xff]
    %v690 = vld [vmem:[#allocation7 + $0x3d8] sm:$0xff]
    %v691 = vld [vmem:[#allocation7 + $0x3e0] sm:$0xff]
    %v692 = vld [vmem:[#allocation7 + $0x3e8] sm:$0xff]
    %v693 = vld [vmem:[#allocation7 + $0x3f0] sm:$0xff]
    %v694 = vld [vmem:[#allocation7 + $0x3f8] sm:$0xff]
    %v696 = vcombine.high %v565, %v565
    %v698 = vunpack.c.l.s4 1966171168
    %v699 = vunpack.c.0.s8 %v698
    %v700 = vlaneseq
    %v701 = vshrl.u32 %v700, 7
    %v702 = vsub.s32 %v699, %v701
    %v703 = vrot.slane %v565, %v702
    %v705 = vunpack.c.l.s4 1966171168
    %v706 = vunpack.c.0.s8 %v705
    %v707 = vlaneseq
    %v708 = vshrl.u32 %v707, 7
    %v709 = vsub.s32 %v706, %v708
    %v710 = vrot.slane %v696, %v709
    %v711 = vcombine.high %v703, %v703
    %v712 = vcombine.high %v710, %v710
    %v714 = vunpack.c.l.s4 1966171168
    %v715 = vunpack.c.0.s8 %v714
    %v716 = vlaneseq
    %v717 = vshrl.u32 %v716, 7
    %v718 = vsub.s32 %v715, %v717
    %v719 = vrot.slane %v703, %v718
    %v721 = vunpack.c.l.s4 1966171168
    %v722 = vunpack.c.0.s8 %v721
    %v723 = vlaneseq
    %v724 = vshrl.u32 %v723, 7
    %v725 = vsub.s32 %v722, %v724
    %v726 = vrot.slane %v710, %v725
    %v728 = vunpack.c.l.s4 1966171168
    %v729 = vunpack.c.0.s8 %v728
    %v730 = vlaneseq
    %v731 = vshrl.u32 %v730, 7
    %v732 = vsub.s32 %v729, %v731
    %v733 = vrot.slane %v711, %v732
    %v735 = vunpack.c.l.s4 1966171168
    %v736 = vunpack.c.0.s8 %v735
    %v737 = vlaneseq
    %v738 = vshrl.u32 %v737, 7
    %v739 = vsub.s32 %v736, %v738
    %v740 = vrot.slane %v712, %v739
    %v741 = vcombine.high %v719, %v719
    %v742 = vcombine.high %v726, %v726
    %v743 = vcombine.high %v733, %v733
    %v744 = vcombine.high %v740, %v740
    %753 = vmatprep.subr.mxu0 0.0
    %754 = vmatpush1.xpose.msra.mxu0 %v567
    %755 = vmatprep.subr.mxu0 0.0
    %756 = vmatpush1.xpose.msra.mxu0 %v568
    %757 = vmatprep.subr.mxu0 0.0
    %758 = vmatpush1.xpose.msra.mxu0 %v569
    %759 = vmatprep.subr.mxu0 0.0
    %760 = vmatpush1.xpose.msra.mxu0 %v570
    %761 = vmatprep.subr.mxu0 0.0
    %762 = vmatpush1.xpose.msra.mxu0 %v571
    %763 = vmatprep.subr.mxu0 0.0
    %764 = vmatpush1.xpose.msra.mxu0 %v572
    %765 = vmatprep.subr.mxu0 0.0
    %766 = vmatpush1.xpose.msra.mxu0 %v573
    %767 = vmatprep.subr.mxu0 0.0
    %768 = vmatpush1.xpose.msra.mxu0 %v574
    %769 = vmatprep.subr.mxu0 0.0
    %770 = vmatpush1.xpose.msra.mxu0 %v575
    %771 = vmatprep.subr.mxu0 0.0
    %772 = vmatpush1.xpose.msra.mxu0 %v576
    %773 = vmatprep.subr.mxu0 0.0
    %774 = vmatpush1.xpose.msra.mxu0 %v577
    %775 = vmatprep.subr.mxu0 0.0
    %776 = vmatpush1.xpose.msra.mxu0 %v578
    %777 = vmatprep.subr.mxu0 0.0
    %778 = vmatpush1.xpose.msra.mxu0 %v579
    %779 = vmatprep.subr.mxu0 0.0
    %780 = vmatpush1.xpose.msra.mxu0 %v580
    %781 = vmatprep.subr.mxu0 0.0
    %782 = vmatpush1.xpose.msra.mxu0 %v581
    %783 = vmatprep.subr.mxu0 0.0
    %784 = vmatpush1.xpose.msra.mxu0 %v582
    %785 = vmatprep.subr.mxu0 0.0
    %786 = vmatpush1.xpose.msra.mxu0 0.0
    %787 = vmatprep.subr.mxu0 0.0
    %788 = vmatpush1.xpose.msra.mxu0 0.0
    %789 = vmatprep.subr.mxu0 0.0
    %790 = vmatpush1.xpose.msra.mxu0 0.0
    %791 = vmatprep.subr.mxu0 0.0
    %792 = vmatpush1.xpose.msra.mxu0 0.0
    %793 = vmatprep.subr.mxu0 0.0
    %794 = vmatpush1.xpose.msra.mxu0 0.0
    %795 = vmatprep.subr.mxu0 0.0
    %796 = vmatpush1.xpose.msra.mxu0 0.0
    %797 = vmatprep.subr.mxu0 0.0
    %798 = vmatpush1.xpose.msra.mxu0 0.0
    %799 = vmatprep.subr.mxu0 0.0
    %800 = vmatpush1.xpose.msra.mxu0 0.0
    %801 = vmatprep.subr.mxu0 0.0
    %802 = vmatpush1.xpose.msra.mxu0 0.0
    %803 = vmatprep.subr.mxu0 0.0
    %804 = vmatpush1.xpose.msra.mxu0 0.0
    %805 = vmatprep.subr.mxu0 0.0
    %806 = vmatpush1.xpose.msra.mxu0 0.0
    %807 = vmatprep.subr.mxu0 0.0
    %808 = vmatpush1.xpose.msra.mxu0 0.0
    %809 = vmatprep.subr.mxu0 0.0
    %810 = vmatpush1.xpose.msra.mxu0 0.0
    %811 = vmatprep.subr.mxu0 0.0
    %812 = vmatpush1.xpose.msra.mxu0 0.0
    %813 = vmatprep.subr.mxu0 0.0
    %814 = vmatpush1.xpose.msra.mxu0 0.0
    %815 = vmatprep.subr.mxu0 0.0
    %816 = vmatpush1.xpose.msra.mxu0 0.0
    %817 = vmatprep.mubr.f32.mxu0 0.0
    %818 = vmatmul.mubr.f32.gmra.mrb[0].mxu0 %v719
    %v819 = vpop.f32.mrb[0].mxu0
    %v820 = vadd.f32 0.0, %v819
    %v821 = vpop.f32.mrb[0].mxu0
    %822 = vdwg.mxu0
    %823 = vmatprep.subr.mxu0 0.0
    %824 = vmatpush1.xpose.msra.mxu0 %v583
    %825 = vmatprep.subr.mxu0 0.0
    %826 = vmatpush1.xpose.msra.mxu0 %v584
    %827 = vmatprep.subr.mxu0 0.0
    %828 = vmatpush1.xpose.msra.mxu0 %v585
    %829 = vmatprep.subr.mxu0 0.0
    %830 = vmatpush1.xpose.msra.mxu0 %v586
    %831 = vmatprep.subr.mxu0 0.0
    %832 = vmatpush1.xpose.msra.mxu0 %v587
    %833 = vmatprep.subr.mxu0 0.0
    %834 = vmatpush1.xpose.msra.mxu0 %v588
    %835 = vmatprep.subr.mxu0 0.0
    %836 = vmatpush1.xpose.msra.mxu0 %v589
    %837 = vmatprep.subr.mxu0 0.0
    %838 = vmatpush1.xpose.msra.mxu0 %v590
    %839 = vmatprep.subr.mxu0 0.0
    %840 = vmatpush1.xpose.msra.mxu0 %v591
    %841 = vmatprep.subr.mxu0 0.0
    %842 = vmatpush1.xpose.msra.mxu0 %v592
    %843 = vmatprep.subr.mxu0 0.0
    %844 = vmatpush1.xpose.msra.mxu0 %v593
    %845 = vmatprep.subr.mxu0 0.0
    %846 = vmatpush1.xpose.msra.mxu0 %v594
    %847 = vmatprep.subr.mxu0 0.0
    %848 = vmatpush1.xpose.msra.mxu0 %v595
    %849 = vmatprep.subr.mxu0 0.0
    %850 = vmatpush1.xpose.msra.mxu0 %v596
    %851 = vmatprep.subr.mxu0 0.0
    %852 = vmatpush1.xpose.msra.mxu0 %v597
    %853 = vmatprep.subr.mxu0 0.0
    %854 = vmatpush1.xpose.msra.mxu0 %v598
    %855 = vmatprep.subr.mxu0 0.0
    %856 = vmatpush1.xpose.msra.mxu0 0.0
    %857 = vmatprep.subr.mxu0 0.0
    %858 = vmatpush1.xpose.msra.mxu0 0.0
    %859 = vmatprep.subr.mxu0 0.0
    %860 = vmatpush1.xpose.msra.mxu0 0.0
    %861 = vmatprep.subr.mxu0 0.0
    %862 = vmatpush1.xpose.msra.mxu0 0.0
    %863 = vmatprep.subr.mxu0 0.0
    %864 = vmatpush1.xpose.msra.mxu0 0.0
    %865 = vmatprep.subr.mxu0 0.0
    %866 = vmatpush1.xpose.msra.mxu0 0.0
    %867 = vmatprep.subr.mxu0 0.0
    %868 = vmatpush1.xpose.msra.mxu0 0.0
    %869 = vmatprep.subr.mxu0 0.0
    %870 = vmatpush1.xpose.msra.mxu0 0.0
    %871 = vmatprep.subr.mxu0 0.0
    %872 = vmatpush1.xpose.msra.mxu0 0.0
    %873 = vmatprep.subr.mxu0 0.0
    %874 = vmatpush1.xpose.msra.mxu0 0.0
    %875 = vmatprep.subr.mxu0 0.0
    %876 = vmatpush1.xpose.msra.mxu0 0.0
    %877 = vmatprep.subr.mxu0 0.0
    %878 = vmatpush1.xpose.msra.mxu0 0.0
    %879 = vmatprep.subr.mxu0 0.0
    %880 = vmatpush1.xpose.msra.mxu0 0.0
    %881 = vmatprep.subr.mxu0 0.0
    %882 = vmatpush1.xpose.msra.mxu0 0.0
    %883 = vmatprep.subr.mxu0 0.0
    %884 = vmatpush1.xpose.msra.mxu0 0.0
    %885 = vmatprep.subr.mxu0 0.0
    %886 = vmatpush1.xpose.msra.mxu0 0.0
    %887 = vmatprep.mubr.f32.mxu0 0.0
    %888 = vmatmul.mubr.f32.gmra.mrb[0].mxu0 %v733
    %v889 = vpop.f32.mrb[0].mxu0
    %v890 = vadd.f32 0.0, %v889
    %v891 = vpop.f32.mrb[0].mxu0
    %892 = vdwg.mxu0
    %893 = vmatprep.subr.mxu0 0.0
    %894 = vmatpush1.xpose.msra.mxu0 %v599
    %895 = vmatprep.subr.mxu0 0.0
    %896 = vmatpush1.xpose.msra.mxu0 %v600
    %897 = vmatprep.subr.mxu0 0.0
    %898 = vmatpush1.xpose.msra.mxu0 %v601
    %899 = vmatprep.subr.mxu0 0.0
    %900 = vmatpush1.xpose.msra.mxu0 %v602
    %901 = vmatprep.subr.mxu0 0.0
    %902 = vmatpush1.xpose.msra.mxu0 %v603
    %903 = vmatprep.subr.mxu0 0.0
    %904 = vmatpush1.xpose.msra.mxu0 %v604
    %905 = vmatprep.subr.mxu0 0.0
    %906 = vmatpush1.xpose.msra.mxu0 %v605
    %907 = vmatprep.subr.mxu0 0.0
    %908 = vmatpush1.xpose.msra.mxu0 %v606
    %909 = vmatprep.subr.mxu0 0.0
    %910 = vmatpush1.xpose.msra.mxu0 %v607
    %911 = vmatprep.subr.mxu0 0.0
    %912 = vmatpush1.xpose.msra.mxu0 %v608
    %913 = vmatprep.subr.mxu0 0.0
    %914 = vmatpush1.xpose.msra.mxu0 %v609
    %915 = vmatprep.subr.mxu0 0.0
    %916 = vmatpush1.xpose.msra.mxu0 %v610
    %917 = vmatprep.subr.mxu0 0.0
    %918 = vmatpush1.xpose.msra.mxu0 %v611
    %919 = vmatprep.subr.mxu0 0.0
    %920 = vmatpush1.xpose.msra.mxu0 %v612
    %921 = vmatprep.subr.mxu0 0.0
    %922 = vmatpush1.xpose.msra.mxu0 %v613
    %923 = vmatprep.subr.mxu0 0.0
    %924 = vmatpush1.xpose.msra.mxu0 %v614
    %925 = vmatprep.subr.mxu0 0.0
    %926 = vmatpush1.xpose.msra.mxu0 0.0
    %927 = vmatprep.subr.mxu0 0.0
    %928 = vmatpush1.xpose.msra.mxu0 0.0
    %929 = vmatprep.subr.mxu0 0.0
    %930 = vmatpush1.xpose.msra.mxu0 0.0
    %931 = vmatprep.subr.mxu0 0.0
    %932 = vmatpush1.xpose.msra.mxu0 0.0
    %933 = vmatprep.subr.mxu0 0.0
    %934 = vmatpush1.xpose.msra.mxu0 0.0
    %935 = vmatprep.subr.mxu0 0.0
    %936 = vmatpush1.xpose.msra.mxu0 0.0
    %937 = vmatprep.subr.mxu0 0.0
    %938 = vmatpush1.xpose.msra.mxu0 0.0
    %939 = vmatprep.subr.mxu0 0.0
    %940 = vmatpush1.xpose.msra.mxu0 0.0
    %941 = vmatprep.subr.mxu0 0.0
    %942 = vmatpush1.xpose.msra.mxu0 0.0
    %943 = vmatprep.subr.mxu0 0.0
    %944 = vmatpush1.xpose.msra.mxu0 0.0
    %945 = vmatprep.subr.mxu0 0.0
    %946 = vmatpush1.xpose.msra.mxu0 0.0
    %947 = vmatprep.subr.mxu0 0.0
    %948 = vmatpush1.xpose.msra.mxu0 0.0
    %949 = vmatprep.subr.mxu0 0.0
    %950 = vmatpush1.xpose.msra.mxu0 0.0
    %951 = vmatprep.subr.mxu0 0.0
    %952 = vmatpush1.xpose.msra.mxu0 0.0
    %953 = vmatprep.subr.mxu0 0.0
    %954 = vmatpush1.xpose.msra.mxu0 0.0
    %955 = vmatprep.subr.mxu0 0.0
    %956 = vmatpush1.xpose.msra.mxu0 0.0
    %957 = vmatprep.mubr.f32.mxu0 0.0
    %958 = vmatmul.mubr.f32.gmra.mrb[0].mxu0 %v741
    %v959 = vpop.f32.mrb[0].mxu0
    %v960 = vadd.f32 0.0, %v959
    %v961 = vpop.f32.mrb[0].mxu0
    %962 = vdwg.mxu0
    %963 = vmatprep.subr.mxu0 0.0
    %964 = vmatpush1.xpose.msra.mxu0 %v615
    %965 = vmatprep.subr.mxu0 0.0
    %966 = vmatpush1.xpose.msra.mxu0 %v616
    %967 = vmatprep.subr.mxu0 0.0
    %968 = vmatpush1.xpose.msra.mxu0 %v617
    %969 = vmatprep.subr.mxu0 0.0
    %970 = vmatpush1.xpose.msra.mxu0 %v618
    %971 = vmatprep.subr.mxu0 0.0
    %972 = vmatpush1.xpose.msra.mxu0 %v619
    %973 = vmatprep.subr.mxu0 0.0
    %974 = vmatpush1.xpose.msra.mxu0 %v620
    %975 = vmatprep.subr.mxu0 0.0
    %976 = vmatpush1.xpose.msra.mxu0 %v621
    %977 = vmatprep.subr.mxu0 0.0
    %978 = vmatpush1.xpose.msra.mxu0 %v622
    %979 = vmatprep.subr.mxu0 0.0
    %980 = vmatpush1.xpose.msra.mxu0 %v623
    %981 = vmatprep.subr.mxu0 0.0
    %982 = vmatpush1.xpose.msra.mxu0 %v624
    %983 = vmatprep.subr.mxu0 0.0
    %984 = vmatpush1.xpose.msra.mxu0 %v625
    %985 = vmatprep.subr.mxu0 0.0
    %986 = vmatpush1.xpose.msra.mxu0 %v626
    %987 = vmatprep.subr.mxu0 0.0
    %988 = vmatpush1.xpose.msra.mxu0 %v627
    %989 = vmatprep.subr.mxu0 0.0
    %990 = vmatpush1.xpose.msra.mxu0 %v628
    %991 = vmatprep.subr.mxu0 0.0
    %992 = vmatpush1.xpose.msra.mxu0 %v629
    %993 = vmatprep.subr.mxu0 0.0
    %994 = vmatpush1.xpose.msra.mxu0 %v630
    %995 = vmatprep.subr.mxu0 0.0
    %996 = vmatpush1.xpose.msra.mxu0 0.0
    %997 = vmatprep.subr.mxu0 0.0
    %998 = vmatpush1.xpose.msra.mxu0 0.0
    %999 = vmatprep.subr.mxu0 0.0
    %1000 = vmatpush1.xpose.msra.mxu0 0.0
    %1001 = vmatprep.subr.mxu0 0.0
    %1002 = vmatpush1.xpose.msra.mxu0 0.0
    %1003 = vmatprep.subr.mxu0 0.0
    %1004 = vmatpush1.xpose.msra.mxu0 0.0
    %1005 = vmatprep.subr.mxu0 0.0
    %1006 = vmatpush1.xpose.msra.mxu0 0.0
    %1007 = vmatprep.subr.mxu0 0.0
    %1008 = vmatpush1.xpose.msra.mxu0 0.0
    %1009 = vmatprep.subr.mxu0 0.0
    %1010 = vmatpush1.xpose.msra.mxu0 0.0
    %1011 = vmatprep.subr.mxu0 0.0
    %1012 = vmatpush1.xpose.msra.mxu0 0.0
    %1013 = vmatprep.subr.mxu0 0.0
    %1014 = vmatpush1.xpose.msra.mxu0 0.0
    %1015 = vmatprep.subr.mxu0 0.0
    %1016 = vmatpush1.xpose.msra.mxu0 0.0
    %1017 = vmatprep.subr.mxu0 0.0
    %1018 = vmatpush1.xpose.msra.mxu0 0.0
    %1019 = vmatprep.subr.mxu0 0.0
    %1020 = vmatpush1.xpose.msra.mxu0 0.0
    %1021 = vmatprep.subr.mxu0 0.0
    %1022 = vmatpush1.xpose.msra.mxu0 0.0
    %1023 = vmatprep.subr.mxu0 0.0
    %1024 = vmatpush1.xpose.msra.mxu0 0.0
    %1025 = vmatprep.subr.mxu0 0.0
    %1026 = vmatpush1.xpose.msra.mxu0 0.0
    %1027 = vmatprep.mubr.f32.mxu0 0.0
    %1028 = vmatmul.mubr.f32.gmra.mrb[0].mxu0 %v743
    %v1029 = vpop.f32.mrb[0].mxu0
    %v1030 = vadd.f32 0.0, %v1029
    %v1031 = vpop.f32.mrb[0].mxu0
    %1032 = vdwg.mxu0
    %1033 = vmatprep.subr.mxu0 0.0
    %1034 = vmatpush1.xpose.msra.mxu0 %v631
    %1035 = vmatprep.subr.mxu0 0.0
    %1036 = vmatpush1.xpose.msra.mxu0 %v632
    %1037 = vmatprep.subr.mxu0 0.0
    %1038 = vmatpush1.xpose.msra.mxu0 %v633
    %1039 = vmatprep.subr.mxu0 0.0
    %1040 = vmatpush1.xpose.msra.mxu0 %v634
    %1041 = vmatprep.subr.mxu0 0.0
    %1042 = vmatpush1.xpose.msra.mxu0 %v635
    %1043 = vmatprep.subr.mxu0 0.0
    %1044 = vmatpush1.xpose.msra.mxu0 %v636
    %1045 = vmatprep.subr.mxu0 0.0
    %1046 = vmatpush1.xpose.msra.mxu0 %v637
    %1047 = vmatprep.subr.mxu0 0.0
    %1048 = vmatpush1.xpose.msra.mxu0 %v638
    %1049 = vmatprep.subr.mxu0 0.0
    %1050 = vmatpush1.xpose.msra.mxu0 %v639
    %1051 = vmatprep.subr.mxu0 0.0
    %1052 = vmatpush1.xpose.msra.mxu0 %v640
    %1053 = vmatprep.subr.mxu0 0.0
    %1054 = vmatpush1.xpose.msra.mxu0 %v641
    %1055 = vmatprep.subr.mxu0 0.0
    %1056 = vmatpush1.xpose.msra.mxu0 %v642
    %1057 = vmatprep.subr.mxu0 0.0
    %1058 = vmatpush1.xpose.msra.mxu0 %v643
    %1059 = vmatprep.subr.mxu0 0.0
    %1060 = vmatpush1.xpose.msra.mxu0 %v644
    %1061 = vmatprep.subr.mxu0 0.0
    %1062 = vmatpush1.xpose.msra.mxu0 %v645
    %1063 = vmatprep.subr.mxu0 0.0
    %1064 = vmatpush1.xpose.msra.mxu0 %v646
    %1065 = vmatprep.subr.mxu0 0.0
    %1066 = vmatpush1.xpose.msra.mxu0 0.0
    %1067 = vmatprep.subr.mxu0 0.0
    %1068 = vmatpush1.xpose.msra.mxu0 0.0
    %1069 = vmatprep.subr.mxu0 0.0
    %1070 = vmatpush1.xpose.msra.mxu0 0.0
    %1071 = vmatprep.subr.mxu0 0.0
    %1072 = vmatpush1.xpose.msra.mxu0 0.0
    %1073 = vmatprep.subr.mxu0 0.0
    %1074 = vmatpush1.xpose.msra.mxu0 0.0
    %1075 = vmatprep.subr.mxu0 0.0
    %1076 = vmatpush1.xpose.msra.mxu0 0.0
    %1077 = vmatprep.subr.mxu0 0.0
    %1078 = vmatpush1.xpose.msra.mxu0 0.0
    %1079 = vmatprep.subr.mxu0 0.0
    %1080 = vmatpush1.xpose.msra.mxu0 0.0
    %1081 = vmatprep.subr.mxu0 0.0
    %1082 = vmatpush1.xpose.msra.mxu0 0.0
    %1083 = vmatprep.subr.mxu0 0.0
    %1084 = vmatpush1.xpose.msra.mxu0 0.0
    %1085 = vmatprep.subr.mxu0 0.0
    %1086 = vmatpush1.xpose.msra.mxu0 0.0
    %1087 = vmatprep.subr.mxu0 0.0
    %1088 = vmatpush1.xpose.msra.mxu0 0.0
    %1089 = vmatprep.subr.mxu0 0.0
    %1090 = vmatpush1.xpose.msra.mxu0 0.0
    %1091 = vmatprep.subr.mxu0 0.0
    %1092 = vmatpush1.xpose.msra.mxu0 0.0
    %1093 = vmatprep.subr.mxu0 0.0
    %1094 = vmatpush1.xpose.msra.mxu0 0.0
    %1095 = vmatprep.subr.mxu0 0.0
    %1096 = vmatpush1.xpose.msra.mxu0 0.0
    %1097 = vmatprep.mubr.f32.mxu0 0.0
    %1098 = vmatmul.mubr.f32.gmra.mrb[0].mxu0 %v726
    %v1099 = vpop.f32.mrb[0].mxu0
    %v1100 = vadd.f32 0.0, %v1099
    %v1101 = vpop.f32.mrb[0].mxu0
    %1102 = vdwg.mxu0
    %1103 = vmatprep.subr.mxu0 0.0
    %1104 = vmatpush1.xpose.msra.mxu0 %v647
    %1105 = vmatprep.subr.mxu0 0.0
    %1106 = vmatpush1.xpose.msra.mxu0 %v648
    %1107 = vmatprep.subr.mxu0 0.0
    %1108 = vmatpush1.xpose.msra.mxu0 %v649
    %1109 = vmatprep.subr.mxu0 0.0
    %1110 = vmatpush1.xpose.msra.mxu0 %v650
    %1111 = vmatprep.subr.mxu0 0.0
    %1112 = vmatpush1.xpose.msra.mxu0 %v651
    %1113 = vmatprep.subr.mxu0 0.0
    %1114 = vmatpush1.xpose.msra.mxu0 %v652
    %1115 = vmatprep.subr.mxu0 0.0
    %1116 = vmatpush1.xpose.msra.mxu0 %v653
    %1117 = vmatprep.subr.mxu0 0.0
    %1118 = vmatpush1.xpose.msra.mxu0 %v654
    %1119 = vmatprep.subr.mxu0 0.0
    %1120 = vmatpush1.xpose.msra.mxu0 %v655
    %1121 = vmatprep.subr.mxu0 0.0
    %1122 = vmatpush1.xpose.msra.mxu0 %v656
    %1123 = vmatprep.subr.mxu0 0.0
    %1124 = vmatpush1.xpose.msra.mxu0 %v657
    %1125 = vmatprep.subr.mxu0 0.0
    %1126 = vmatpush1.xpose.msra.mxu0 %v658
    %1127 = vmatprep.subr.mxu0 0.0
    %1128 = vmatpush1.xpose.msra.mxu0 %v659
    %1129 = vmatprep.subr.mxu0 0.0
    %1130 = vmatpush1.xpose.msra.mxu0 %v660
    %1131 = vmatprep.subr.mxu0 0.0
    %1132 = vmatpush1.xpose.msra.mxu0 %v661
    %1133 = vmatprep.subr.mxu0 0.0
    %1134 = vmatpush1.xpose.msra.mxu0 %v662
    %1135 = vmatprep.subr.mxu0 0.0
    %1136 = vmatpush1.xpose.msra.mxu0 0.0
    %1137 = vmatprep.subr.mxu0 0.0
    %1138 = vmatpush1.xpose.msra.mxu0 0.0
    %1139 = vmatprep.subr.mxu0 0.0
    %1140 = vmatpush1.xpose.msra.mxu0 0.0
    %1141 = vmatprep.subr.mxu0 0.0
    %1142 = vmatpush1.xpose.msra.mxu0 0.0
    %1143 = vmatprep.subr.mxu0 0.0
    %1144 = vmatpush1.xpose.msra.mxu0 0.0
    %1145 = vmatprep.subr.mxu0 0.0
    %1146 = vmatpush1.xpose.msra.mxu0 0.0
    %1147 = vmatprep.subr.mxu0 0.0
    %1148 = vmatpush1.xpose.msra.mxu0 0.0
    %1149 = vmatprep.subr.mxu0 0.0
    %1150 = vmatpush1.xpose.msra.mxu0 0.0
    %1151 = vmatprep.subr.mxu0 0.0
    %1152 = vmatpush1.xpose.msra.mxu0 0.0
    %1153 = vmatprep.subr.mxu0 0.0
    %1154 = vmatpush1.xpose.msra.mxu0 0.0
    %1155 = vmatprep.subr.mxu0 0.0
    %1156 = vmatpush1.xpose.msra.mxu0 0.0
    %1157 = vmatprep.subr.mxu0 0.0
    %1158 = vmatpush1.xpose.msra.mxu0 0.0
    %1159 = vmatprep.subr.mxu0 0.0
    %1160 = vmatpush1.xpose.msra.mxu0 0.0
    %1161 = vmatprep.subr.mxu0 0.0
    %1162 = vmatpush1.xpose.msra.mxu0 0.0
    %1163 = vmatprep.subr.mxu0 0.0
    %1164 = vmatpush1.xpose.msra.mxu0 0.0
    %1165 = vmatprep.subr.mxu0 0.0
    %1166 = vmatpush1.xpose.msra.mxu0 0.0
    %1167 = vmatprep.mubr.f32.mxu0 0.0
    %1168 = vmatmul.mubr.f32.gmra.mrb[0].mxu0 %v740
    %v1169 = vpop.f32.mrb[0].mxu0
    %v1170 = vadd.f32 0.0, %v1169
    %v1171 = vpop.f32.mrb[0].mxu0
    %1172 = vdwg.mxu0
    %1173 = vmatprep.subr.mxu0 0.0
    %1174 = vmatpush1.xpose.msra.mxu0 %v663
    %1175 = vmatprep.subr.mxu0 0.0
    %1176 = vmatpush1.xpose.msra.mxu0 %v664
    %1177 = vmatprep.subr.mxu0 0.0
    %1178 = vmatpush1.xpose.msra.mxu0 %v665
    %1179 = vmatprep.subr.mxu0 0.0
    %1180 = vmatpush1.xpose.msra.mxu0 %v666
    %1181 = vmatprep.subr.mxu0 0.0
    %1182 = vmatpush1.xpose.msra.mxu0 %v667
    %1183 = vmatprep.subr.mxu0 0.0
    %1184 = vmatpush1.xpose.msra.mxu0 %v668
    %1185 = vmatprep.subr.mxu0 0.0
    %1186 = vmatpush1.xpose.msra.mxu0 %v669
    %1187 = vmatprep.subr.mxu0 0.0
    %1188 = vmatpush1.xpose.msra.mxu0 %v670
    %1189 = vmatprep.subr.mxu0 0.0
    %1190 = vmatpush1.xpose.msra.mxu0 %v671
    %1191 = vmatprep.subr.mxu0 0.0
    %1192 = vmatpush1.xpose.msra.mxu0 %v672
    %1193 = vmatprep.subr.mxu0 0.0
    %1194 = vmatpush1.xpose.msra.mxu0 %v673
    %1195 = vmatprep.subr.mxu0 0.0
    %1196 = vmatpush1.xpose.msra.mxu0 %v674
    %1197 = vmatprep.subr.mxu0 0.0
    %1198 = vmatpush1.xpose.msra.mxu0 %v675
    %1199 = vmatprep.subr.mxu0 0.0
    %1200 = vmatpush1.xpose.msra.mxu0 %v676
    %1201 = vmatprep.subr.mxu0 0.0
    %1202 = vmatpush1.xpose.msra.mxu0 %v677
    %1203 = vmatprep.subr.mxu0 0.0
    %1204 = vmatpush1.xpose.msra.mxu0 %v678
    %1205 = vmatprep.subr.mxu0 0.0
    %1206 = vmatpush1.xpose.msra.mxu0 0.0
    %1207 = vmatprep.subr.mxu0 0.0
    %1208 = vmatpush1.xpose.msra.mxu0 0.0
    %1209 = vmatprep.subr.mxu0 0.0
    %1210 = vmatpush1.xpose.msra.mxu0 0.0
    %1211 = vmatprep.subr.mxu0 0.0
    %1212 = vmatpush1.xpose.msra.mxu0 0.0
    %1213 = vmatprep.subr.mxu0 0.0
    %1214 = vmatpush1.xpose.msra.mxu0 0.0
    %1215 = vmatprep.subr.mxu0 0.0
    %1216 = vmatpush1.xpose.msra.mxu0 0.0
    %1217 = vmatprep.subr.mxu0 0.0
    %1218 = vmatpush1.xpose.msra.mxu0 0.0
    %1219 = vmatprep.subr.mxu0 0.0
    %1220 = vmatpush1.xpose.msra.mxu0 0.0
    %1221 = vmatprep.subr.mxu0 0.0
    %1222 = vmatpush1.xpose.msra.mxu0 0.0
    %1223 = vmatprep.subr.mxu0 0.0
    %1224 = vmatpush1.xpose.msra.mxu0 0.0
    %1225 = vmatprep.subr.mxu0 0.0
    %1226 = vmatpush1.xpose.msra.mxu0 0.0
    %1227 = vmatprep.subr.mxu0 0.0
    %1228 = vmatpush1.xpose.msra.mxu0 0.0
    %1229 = vmatprep.subr.mxu0 0.0
    %1230 = vmatpush1.xpose.msra.mxu0 0.0
    %1231 = vmatprep.subr.mxu0 0.0
    %1232 = vmatpush1.xpose.msra.mxu0 0.0
    %1233 = vmatprep.subr.mxu0 0.0
    %1234 = vmatpush1.xpose.msra.mxu0 0.0
    %1235 = vmatprep.subr.mxu0 0.0
    %1236 = vmatpush1.xpose.msra.mxu0 0.0
    %1237 = vmatprep.mubr.f32.mxu0 0.0
    %1238 = vmatmul.mubr.f32.gmra.mrb[0].mxu0 %v742
    %v1239 = vpop.f32.mrb[0].mxu0
    %v1240 = vadd.f32 0.0, %v1239
    %v1241 = vpop.f32.mrb[0].mxu0
    %1242 = vdwg.mxu0
    %1243 = vmatprep.subr.mxu0 0.0
    %1244 = vmatpush1.xpose.msra.mxu0 %v679
    %1245 = vmatprep.subr.mxu0 0.0
    %1246 = vmatpush1.xpose.msra.mxu0 %v680
    %1247 = vmatprep.subr.mxu0 0.0
    %1248 = vmatpush1.xpose.msra.mxu0 %v681
    %1249 = vmatprep.subr.mxu0 0.0
    %1250 = vmatpush1.xpose.msra.mxu0 %v682
    %1251 = vmatprep.subr.mxu0 0.0
    %1252 = vmatpush1.xpose.msra.mxu0 %v683
    %1253 = vmatprep.subr.mxu0 0.0
    %1254 = vmatpush1.xpose.msra.mxu0 %v684
    %1255 = vmatprep.subr.mxu0 0.0
    %1256 = vmatpush1.xpose.msra.mxu0 %v685
    %1257 = vmatprep.subr.mxu0 0.0
    %1258 = vmatpush1.xpose.msra.mxu0 %v686
    %1259 = vmatprep.subr.mxu0 0.0
    %1260 = vmatpush1.xpose.msra.mxu0 %v687
    %1261 = vmatprep.subr.mxu0 0.0
    %1262 = vmatpush1.xpose.msra.mxu0 %v688
    %1263 = vmatprep.subr.mxu0 0.0
    %1264 = vmatpush1.xpose.msra.mxu0 %v689
    %1265 = vmatprep.subr.mxu0 0.0
    %1266 = vmatpush1.xpose.msra.mxu0 %v690
    %1267 = vmatprep.subr.mxu0 0.0
    %1268 = vmatpush1.xpose.msra.mxu0 %v691
    %1269 = vmatprep.subr.mxu0 0.0
    %1270 = vmatpush1.xpose.msra.mxu0 %v692
    %1271 = vmatprep.subr.mxu0 0.0
    %1272 = vmatpush1.xpose.msra.mxu0 %v693
    %1273 = vmatprep.subr.mxu0 0.0
    %1274 = vmatpush1.xpose.msra.mxu0 %v694
    %1275 = vmatprep.subr.mxu0 0.0
    %1276 = vmatpush1.xpose.msra.mxu0 0.0
    %1277 = vmatprep.subr.mxu0 0.0
    %1278 = vmatpush1.xpose.msra.mxu0 0.0
    %1279 = vmatprep.subr.mxu0 0.0
    %1280 = vmatpush1.xpose.msra.mxu0 0.0
    %1281 = vmatprep.subr.mxu0 0.0
    %1282 = vmatpush1.xpose.msra.mxu0 0.0
    %1283 = vmatprep.subr.mxu0 0.0
    %1284 = vmatpush1.xpose.msra.mxu0 0.0
    %1285 = vmatprep.subr.mxu0 0.0
    %1286 = vmatpush1.xpose.msra.mxu0 0.0
    %1287 = vmatprep.subr.mxu0 0.0
    %1288 = vmatpush1.xpose.msra.mxu0 0.0
    %1289 = vmatprep.subr.mxu0 0.0
    %1290 = vmatpush1.xpose.msra.mxu0 0.0
    %1291 = vmatprep.subr.mxu0 0.0
    %1292 = vmatpush1.xpose.msra.mxu0 0.0
    %1293 = vmatprep.subr.mxu0 0.0
    %1294 = vmatpush1.xpose.msra.mxu0 0.0
    %1295 = vmatprep.subr.mxu0 0.0
    %1296 = vmatpush1.xpose.msra.mxu0 0.0
    %1297 = vmatprep.subr.mxu0 0.0
    %1298 = vmatpush1.xpose.msra.mxu0 0.0
    %1299 = vmatprep.subr.mxu0 0.0
    %1300 = vmatpush1.xpose.msra.mxu0 0.0
    %1301 = vmatprep.subr.mxu0 0.0
    %1302 = vmatpush1.xpose.msra.mxu0 0.0
    %1303 = vmatprep.subr.mxu0 0.0
    %1304 = vmatpush1.xpose.msra.mxu0 0.0
    %1305 = vmatprep.subr.mxu0 0.0
    %1306 = vmatpush1.xpose.msra.mxu0 0.0
    %1307 = vmatprep.mubr.f32.mxu0 0.0
    %1308 = vmatmul.mubr.f32.gmra.mrb[0].mxu0 %v744
    %v1309 = vpop.f32.mrb[0].mxu0
    %v1310 = vadd.f32 0.0, %v1309
    %v1311 = vpop.f32.mrb[0].mxu0
    %1312 = vdwg.mxu0
    %v1313 = vlaneseq
    %v1314 = vand.u32 %v1313, 127
    %vm1315 = vcmp.lt.s32.totalorder %v1314, 16
    %v1324 = vrot.slane %v890, 7
    %vm1325 = vcmask 1041409
    %v1326 = vsel %vm1325, %v1324, %v820
    %v1327 = vrot.slane %v960, 6
    %vm1328 = vcmask 1042434
    %v1329 = vsel %vm1328, %v1327, %v1326
    %v1330 = vrot.slane %v1030, 5
    %vm1331 = vcmask 1043459
    %v1332 = vsel %vm1331, %v1330, %v1329
    %v1333 = vrot.slane %v1100, 4
    %vm1334 = vcmask 1044484
    %v1335 = vsel %vm1334, %v1333, %v1332
    %v1336 = vrot.slane %v1170, 3
    %vm1337 = vcmask 1045509
    %v1338 = vsel %vm1337, %v1336, %v1335
    %v1339 = vrot.slane %v1240, 2
    %vm1340 = vcmask 1046534
    %v1341 = vsel %vm1340, %v1339, %v1338
    %v1342 = vrot.slane %v1310, 1
    %vm1343 = vcmask 1047559
    %v1344 = vsel %vm1343, %v1342, %v1341
    %v1346 = vsel %vm1315, %v1344, -1e+30
    %1347 = vmax.xlane.f32.xlu0 %v1346
    %v1348 = vpop.xlane.xlu0 %1347
    %v1349 = vsub.f32 %v1346, %v1348
    %v1350 = vmul.f32 %v1349, 1.442695
    %v1351 = vpow.pop %v1350
    %1352 = vadd.xlane.f32.xlu0 %v1351
    %v1353 = vpop.xlane.xlu0 %1352
    %v1354 = vrcp.pop %v1353
    %v1355 = vmul.f32 %v1351, %v1354
    %1356 = vst [vmem:[#allocation15] sm:$0xff] %v1355
    %v1358 = vcombine.high %v1355, %v1355
    %v1360 = vunpack.c.l.s4 1966171168
    %v1361 = vunpack.c.0.s8 %v1360
    %v1362 = vlaneseq
    %v1363 = vshrl.u32 %v1362, 7
    %v1364 = vsub.s32 %v1361, %v1363
    %v1365 = vrot.slane %v1355, %v1364
    %v1367 = vunpack.c.l.s4 1966171168
    %v1368 = vunpack.c.0.s8 %v1367
    %v1369 = vlaneseq
    %v1370 = vshrl.u32 %v1369, 7
    %v1371 = vsub.s32 %v1368, %v1370
    %v1372 = vrot.slane %v1358, %v1371
    %v1373 = vcombine.high %v1365, %v1365
    %v1374 = vcombine.high %v1372, %v1372
    %v1376 = vunpack.c.l.s4 1966171168
    %v1377 = vunpack.c.0.s8 %v1376
    %v1378 = vlaneseq
    %v1379 = vshrl.u32 %v1378, 7
    %v1380 = vsub.s32 %v1377, %v1379
    %v1381 = vrot.slane %v1365, %v1380
    %v1383 = vunpack.c.l.s4 1966171168
    %v1384 = vunpack.c.0.s8 %v1383
    %v1385 = vlaneseq
    %v1386 = vshrl.u32 %v1385, 7
    %v1387 = vsub.s32 %v1384, %v1386
    %v1388 = vrot.slane %v1372, %v1387
    %v1390 = vunpack.c.l.s4 1966171168
    %v1391 = vunpack.c.0.s8 %v1390
    %v1392 = vlaneseq
    %v1393 = vshrl.u32 %v1392, 7
    %v1394 = vsub.s32 %v1391, %v1393
    %v1395 = vrot.slane %v1373, %v1394
    %v1397 = vunpack.c.l.s4 1966171168
    %v1398 = vunpack.c.0.s8 %v1397
    %v1399 = vlaneseq
    %v1400 = vshrl.u32 %v1399, 7
    %v1401 = vsub.s32 %v1398, %v1400
    %v1402 = vrot.slane %v1374, %v1401
    %v1403 = vcombine.high %v1381, %v1381
    %v1404 = vcombine.high %v1388, %v1388
    %v1405 = vcombine.high %v1395, %v1395
    %v1406 = vcombine.high %v1402, %v1402
    %1415 = vmatprep.subr.mxu0 0.0
    %1416 = vmatpush1.msra.mxu0 %v567
    %1417 = vmatprep.subr.mxu0 0.0
    %1418 = vmatpush1.msra.mxu0 %v568
    %1419 = vmatprep.subr.mxu0 0.0
    %1420 = vmatpush1.msra.mxu0 %v569
    %1421 = vmatprep.subr.mxu0 0.0
    %1422 = vmatpush1.msra.mxu0 %v570
    %1423 = vmatprep.subr.mxu0 0.0
    %1424 = vmatpush1.msra.mxu0 %v571
    %1425 = vmatprep.subr.mxu0 0.0
    %1426 = vmatpush1.msra.mxu0 %v572
    %1427 = vmatprep.subr.mxu0 0.0
    %1428 = vmatpush1.msra.mxu0 %v573
    %1429 = vmatprep.subr.mxu0 0.0
    %1430 = vmatpush1.msra.mxu0 %v574
    %1431 = vmatprep.subr.mxu0 0.0
    %1432 = vmatpush1.msra.mxu0 %v575
    %1433 = vmatprep.subr.mxu0 0.0
    %1434 = vmatpush1.msra.mxu0 %v576
    %1435 = vmatprep.subr.mxu0 0.0
    %1436 = vmatpush1.msra.mxu0 %v577
    %1437 = vmatprep.subr.mxu0 0.0
    %1438 = vmatpush1.msra.mxu0 %v578
    %1439 = vmatprep.subr.mxu0 0.0
    %1440 = vmatpush1.msra.mxu0 %v579
    %1441 = vmatprep.subr.mxu0 0.0
    %1442 = vmatpush1.msra.mxu0 %v580
    %1443 = vmatprep.subr.mxu0 0.0
    %1444 = vmatpush1.msra.mxu0 %v581
    %1445 = vmatprep.subr.mxu0 0.0
    %1446 = vmatpush1.msra.mxu0 %v582
    %1447 = vmatprep.subr.mxu0 0.0
    %1448 = vmatpush1.msra.mxu0 0.0
    %1449 = vmatprep.subr.mxu0 0.0
    %1450 = vmatpush1.msra.mxu0 0.0
    %1451 = vmatprep.subr.mxu0 0.0
    %1452 = vmatpush1.msra.mxu0 0.0
    %1453 = vmatprep.subr.mxu0 0.0
    %1454 = vmatpush1.msra.mxu0 0.0
    %1455 = vmatprep.subr.mxu0 0.0
    %1456 = vmatpush1.msra.mxu0 0.0
    %1457 = vmatprep.subr.mxu0 0.0
    %1458 = vmatpush1.msra.mxu0 0.0
    %1459 = vmatprep.subr.mxu0 0.0
    %1460 = vmatpush1.msra.mxu0 0.0
    %1461 = vmatprep.subr.mxu0 0.0
    %1462 = vmatpush1.msra.mxu0 0.0
    %1463 = vmatprep.subr.mxu0 0.0
    %1464 = vmatpush1.msra.mxu0 0.0
    %1465 = vmatprep.subr.mxu0 0.0
    %1466 = vmatpush1.msra.mxu0 0.0
    %1467 = vmatprep.subr.mxu0 0.0
    %1468 = vmatpush1.msra.mxu0 0.0
    %1469 = vmatprep.subr.mxu0 0.0
    %1470 = vmatpush1.msra.mxu0 0.0
    %1471 = vmatprep.subr.mxu0 0.0
    %1472 = vmatpush1.msra.mxu0 0.0
    %1473 = vmatprep.subr.mxu0 0.0
    %1474 = vmatpush1.msra.mxu0 0.0
    %1475 = vmatprep.subr.mxu0 0.0
    %1476 = vmatpush1.msra.mxu0 0.0
    %1477 = vmatprep.subr.mxu0 0.0
    %1478 = vmatpush1.msra.mxu0 0.0
    %1479 = vmatprep.mubr.f32.mxu0 0.0
    %1480 = vmatmul.mubr.f32.gmra.mrb[0].mxu0 %v1381
    %v1481 = vpop.f32.mrb[0].mxu0
    %v1482 = vadd.f32 0.0, %v1481
    %v1483 = vpop.f32.mrb[0].mxu0
    %1484 = vdwg.mxu0
    %1485 = vmatprep.subr.mxu0 0.0
    %1486 = vmatpush1.msra.mxu0 %v583
    %1487 = vmatprep.subr.mxu0 0.0
    %1488 = vmatpush1.msra.mxu0 %v584
    %1489 = vmatprep.subr.mxu0 0.0
    %1490 = vmatpush1.msra.mxu0 %v585
    %1491 = vmatprep.subr.mxu0 0.0
    %1492 = vmatpush1.msra.mxu0 %v586
    %1493 = vmatprep.subr.mxu0 0.0
    %1494 = vmatpush1.msra.mxu0 %v587
    %1495 = vmatprep.subr.mxu0 0.0
    %1496 = vmatpush1.msra.mxu0 %v588
    %1497 = vmatprep.subr.mxu0 0.0
    %1498 = vmatpush1.msra.mxu0 %v589
    %1499 = vmatprep.subr.mxu0 0.0
    %1500 = vmatpush1.msra.mxu0 %v590
    %1501 = vmatprep.subr.mxu0 0.0
    %1502 = vmatpush1.msra.mxu0 %v591
    %1503 = vmatprep.subr.mxu0 0.0
    %1504 = vmatpush1.msra.mxu0 %v592
    %1505 = vmatprep.subr.mxu0 0.0
    %1506 = vmatpush1.msra.mxu0 %v593
    %1507 = vmatprep.subr.mxu0 0.0
    %1508 = vmatpush1.msra.mxu0 %v594
    %1509 = vmatprep.subr.mxu0 0.0
    %1510 = vmatpush1.msra.mxu0 %v595
    %1511 = vmatprep.subr.mxu0 0.0
    %1512 = vmatpush1.msra.mxu0 %v596
    %1513 = vmatprep.subr.mxu0 0.0
    %1514 = vmatpush1.msra.mxu0 %v597
    %1515 = vmatprep.subr.mxu0 0.0
    %1516 = vmatpush1.msra.mxu0 %v598
    %1517 = vmatprep.subr.mxu0 0.0
    %1518 = vmatpush1.msra.mxu0 0.0
    %1519 = vmatprep.subr.mxu0 0.0
    %1520 = vmatpush1.msra.mxu0 0.0
    %1521 = vmatprep.subr.mxu0 0.0
    %1522 = vmatpush1.msra.mxu0 0.0
    %1523 = vmatprep.subr.mxu0 0.0
    %1524 = vmatpush1.msra.mxu0 0.0
    %1525 = vmatprep.subr.mxu0 0.0
    %1526 = vmatpush1.msra.mxu0 0.0
    %1527 = vmatprep.subr.mxu0 0.0
    %1528 = vmatpush1.msra.mxu0 0.0
    %1529 = vmatprep.subr.mxu0 0.0
    %1530 = vmatpush1.msra.mxu0 0.0
    %1531 = vmatprep.subr.mxu0 0.0
    %1532 = vmatpush1.msra.mxu0 0.0
    %1533 = vmatprep.subr.mxu0 0.0
    %1534 = vmatpush1.msra.mxu0 0.0
    %1535 = vmatprep.subr.mxu0 0.0
    %1536 = vmatpush1.msra.mxu0 0.0
    %1537 = vmatprep.subr.mxu0 0.0
    %1538 = vmatpush1.msra.mxu0 0.0
    %1539 = vmatprep.subr.mxu0 0.0
    %1540 = vmatpush1.msra.mxu0 0.0
    %1541 = vmatprep.subr.mxu0 0.0
    %1542 = vmatpush1.msra.mxu0 0.0
    %1543 = vmatprep.subr.mxu0 0.0
    %1544 = vmatpush1.msra.mxu0 0.0
    %1545 = vmatprep.subr.mxu0 0.0
    %1546 = vmatpush1.msra.mxu0 0.0
    %1547 = vmatprep.subr.mxu0 0.0
    %1548 = vmatpush1.msra.mxu0 0.0
    %1549 = vmatprep.mubr.f32.mxu0 0.0
    %1550 = vmatmul.mubr.f32.gmra.mrb[0].mxu0 %v1395
    %v1551 = vpop.f32.mrb[0].mxu0
    %v1552 = vadd.f32 0.0, %v1551
    %v1553 = vpop.f32.mrb[0].mxu0
    %1554 = vdwg.mxu0
    %1555 = vmatprep.subr.mxu0 0.0
    %1556 = vmatpush1.msra.mxu0 %v599
    %1557 = vmatprep.subr.mxu0 0.0
    %1558 = vmatpush1.msra.mxu0 %v600
    %1559 = vmatprep.subr.mxu0 0.0
    %1560 = vmatpush1.msra.mxu0 %v601
    %1561 = vmatprep.subr.mxu0 0.0
    %1562 = vmatpush1.msra.mxu0 %v602
    %1563 = vmatprep.subr.mxu0 0.0
    %1564 = vmatpush1.msra.mxu0 %v603
    %1565 = vmatprep.subr.mxu0 0.0
    %1566 = vmatpush1.msra.mxu0 %v604
    %1567 = vmatprep.subr.mxu0 0.0
    %1568 = vmatpush1.msra.mxu0 %v605
    %1569 = vmatprep.subr.mxu0 0.0
    %1570 = vmatpush1.msra.mxu0 %v606
    %1571 = vmatprep.subr.mxu0 0.0
    %1572 = vmatpush1.msra.mxu0 %v607
    %1573 = vmatprep.subr.mxu0 0.0
    %1574 = vmatpush1.msra.mxu0 %v608
    %1575 = vmatprep.subr.mxu0 0.0
    %1576 = vmatpush1.msra.mxu0 %v609
    %1577 = vmatprep.subr.mxu0 0.0
    %1578 = vmatpush1.msra.mxu0 %v610
    %1579 = vmatprep.subr.mxu0 0.0
    %1580 = vmatpush1.msra.mxu0 %v611
    %1581 = vmatprep.subr.mxu0 0.0
    %1582 = vmatpush1.msra.mxu0 %v612
    %1583 = vmatprep.subr.mxu0 0.0
    %1584 = vmatpush1.msra.mxu0 %v613
    %1585 = vmatprep.subr.mxu0 0.0
    %1586 = vmatpush1.msra.mxu0 %v614
    %1587 = vmatprep.subr.mxu0 0.0
    %1588 = vmatpush1.msra.mxu0 0.0
    %1589 = vmatprep.subr.mxu0 0.0
    %1590 = vmatpush1.msra.mxu0 0.0
    %1591 = vmatprep.subr.mxu0 0.0
    %1592 = vmatpush1.msra.mxu0 0.0
    %1593 = vmatprep.subr.mxu0 0.0
    %1594 = vmatpush1.msra.mxu0 0.0
    %1595 = vmatprep.subr.mxu0 0.0
    %1596 = vmatpush1.msra.mxu0 0.0
    %1597 = vmatprep.subr.mxu0 0.0
    %1598 = vmatpush1.msra.mxu0 0.0
    %1599 = vmatprep.subr.mxu0 0.0
    %1600 = vmatpush1.msra.mxu0 0.0
    %1601 = vmatprep.subr.mxu0 0.0
    %1602 = vmatpush1.msra.mxu0 0.0
    %1603 = vmatprep.subr.mxu0 0.0
    %1604 = vmatpush1.msra.mxu0 0.0
    %1605 = vmatprep.subr.mxu0 0.0
    %1606 = vmatpush1.msra.mxu0 0.0
    %1607 = vmatprep.subr.mxu0 0.0
    %1608 = vmatpush1.msra.mxu0 0.0
    %1609 = vmatprep.subr.mxu0 0.0
    %1610 = vmatpush1.msra.mxu0 0.0
    %1611 = vmatprep.subr.mxu0 0.0
    %1612 = vmatpush1.msra.mxu0 0.0
    %1613 = vmatprep.subr.mxu0 0.0
    %1614 = vmatpush1.msra.mxu0 0.0
    %1615 = vmatprep.subr.mxu0 0.0
    %1616 = vmatpush1.msra.mxu0 0.0
    %1617 = vmatprep.subr.mxu0 0.0
    %1618 = vmatpush1.msra.mxu0 0.0
    %1619 = vmatprep.mubr.f32.mxu0 0.0
    %1620 = vmatmul.mubr.f32.gmra.mrb[0].mxu0 %v1403
    %v1621 = vpop.f32.mrb[0].mxu0
    %v1622 = vadd.f32 0.0, %v1621
    %v1623 = vpop.f32.mrb[0].mxu0
    %1624 = vdwg.mxu0
    %1625 = vmatprep.subr.mxu0 0.0
    %1626 = vmatpush1.msra.mxu0 %v615
    %1627 = vmatprep.subr.mxu0 0.0
    %1628 = vmatpush1.msra.mxu0 %v616
    %1629 = vmatprep.subr.mxu0 0.0
    %1630 = vmatpush1.msra.mxu0 %v617
    %1631 = vmatprep.subr.mxu0 0.0
    %1632 = vmatpush1.msra.mxu0 %v618
    %1633 = vmatprep.subr.mxu0 0.0
    %1634 = vmatpush1.msra.mxu0 %v619
    %1635 = vmatprep.subr.mxu0 0.0
    %1636 = vmatpush1.msra.mxu0 %v620
    %1637 = vmatprep.subr.mxu0 0.0
    %1638 = vmatpush1.msra.mxu0 %v621
    %1639 = vmatprep.subr.mxu0 0.0
    %1640 = vmatpush1.msra.mxu0 %v622
    %1641 = vmatprep.subr.mxu0 0.0
    %1642 = vmatpush1.msra.mxu0 %v623
    %1643 = vmatprep.subr.mxu0 0.0
    %1644 = vmatpush1.msra.mxu0 %v624
    %1645 = vmatprep.subr.mxu0 0.0
    %1646 = vmatpush1.msra.mxu0 %v625
    %1647 = vmatprep.subr.mxu0 0.0
    %1648 = vmatpush1.msra.mxu0 %v626
    %1649 = vmatprep.subr.mxu0 0.0
    %1650 = vmatpush1.msra.mxu0 %v627
    %1651 = vmatprep.subr.mxu0 0.0
    %1652 = vmatpush1.msra.mxu0 %v628
    %1653 = vmatprep.subr.mxu0 0.0
    %1654 = vmatpush1.msra.mxu0 %v629
    %1655 = vmatprep.subr.mxu0 0.0
    %1656 = vmatpush1.msra.mxu0 %v630
    %1657 = vmatprep.subr.mxu0 0.0
    %1658 = vmatpush1.msra.mxu0 0.0
    %1659 = vmatprep.subr.mxu0 0.0
    %1660 = vmatpush1.msra.mxu0 0.0
    %1661 = vmatprep.subr.mxu0 0.0
    %1662 = vmatpush1.msra.mxu0 0.0
    %1663 = vmatprep.subr.mxu0 0.0
    %1664 = vmatpush1.msra.mxu0 0.0
    %1665 = vmatprep.subr.mxu0 0.0
    %1666 = vmatpush1.msra.mxu0 0.0
    %1667 = vmatprep.subr.mxu0 0.0
    %1668 = vmatpush1.msra.mxu0 0.0
    %1669 = vmatprep.subr.mxu0 0.0
    %1670 = vmatpush1.msra.mxu0 0.0
    %1671 = vmatprep.subr.mxu0 0.0
    %1672 = vmatpush1.msra.mxu0 0.0
    %1673 = vmatprep.subr.mxu0 0.0
    %1674 = vmatpush1.msra.mxu0 0.0
    %1675 = vmatprep.subr.mxu0 0.0
    %1676 = vmatpush1.msra.mxu0 0.0
    %1677 = vmatprep.subr.mxu0 0.0
    %1678 = vmatpush1.msra.mxu0 0.0
    %1679 = vmatprep.subr.mxu0 0.0
    %1680 = vmatpush1.msra.mxu0 0.0
    %1681 = vmatprep.subr.mxu0 0.0
    %1682 = vmatpush1.msra.mxu0 0.0
    %1683 = vmatprep.subr.mxu0 0.0
    %1684 = vmatpush1.msra.mxu0 0.0
    %1685 = vmatprep.subr.mxu0 0.0
    %1686 = vmatpush1.msra.mxu0 0.0
    %1687 = vmatprep.subr.mxu0 0.0
    %1688 = vmatpush1.msra.mxu0 0.0
    %1689 = vmatprep.mubr.f32.mxu0 0.0
    %1690 = vmatmul.mubr.f32.gmra.mrb[0].mxu0 %v1405
    %v1691 = vpop.f32.mrb[0].mxu0
    %v1692 = vadd.f32 0.0, %v1691
    %v1693 = vpop.f32.mrb[0].mxu0
    %1694 = vdwg.mxu0
    %1695 = vmatprep.subr.mxu0 0.0
    %1696 = vmatpush1.msra.mxu0 %v631
    %1697 = vmatprep.subr.mxu0 0.0
    %1698 = vmatpush1.msra.mxu0 %v632
    %1699 = vmatprep.subr.mxu0 0.0
    %1700 = vmatpush1.msra.mxu0 %v633
    %1701 = vmatprep.subr.mxu0 0.0
    %1702 = vmatpush1.msra.mxu0 %v634
    %1703 = vmatprep.subr.mxu0 0.0
    %1704 = vmatpush1.msra.mxu0 %v635
    %1705 = vmatprep.subr.mxu0 0.0
    %1706 = vmatpush1.msra.mxu0 %v636
    %1707 = vmatprep.subr.mxu0 0.0
    %1708 = vmatpush1.msra.mxu0 %v637
    %1709 = vmatprep.subr.mxu0 0.0
    %1710 = vmatpush1.msra.mxu0 %v638
    %1711 = vmatprep.subr.mxu0 0.0
    %1712 = vmatpush1.msra.mxu0 %v639
    %1713 = vmatprep.subr.mxu0 0.0
    %1714 = vmatpush1.msra.mxu0 %v640
    %1715 = vmatprep.subr.mxu0 0.0
    %1716 = vmatpush1.msra.mxu0 %v641
    %1717 = vmatprep.subr.mxu0 0.0
    %1718 = vmatpush1.msra.mxu0 %v642
    %1719 = vmatprep.subr.mxu0 0.0
    %1720 = vmatpush1.msra.mxu0 %v643
    %1721 = vmatprep.subr.mxu0 0.0
    %1722 = vmatpush1.msra.mxu0 %v644
    %1723 = vmatprep.subr.mxu0 0.0
    %1724 = vmatpush1.msra.mxu0 %v645
    %1725 = vmatprep.subr.mxu0 0.0
    %1726 = vmatpush1.msra.mxu0 %v646
    %1727 = vmatprep.subr.mxu0 0.0
    %1728 = vmatpush1.msra.mxu0 0.0
    %1729 = vmatprep.subr.mxu0 0.0
    %1730 = vmatpush1.msra.mxu0 0.0
    %1731 = vmatprep.subr.mxu0 0.0
    %1732 = vmatpush1.msra.mxu0 0.0
    %1733 = vmatprep.subr.mxu0 0.0
    %1734 = vmatpush1.msra.mxu0 0.0
    %1735 = vmatprep.subr.mxu0 0.0
    %1736 = vmatpush1.msra.mxu0 0.0
    %1737 = vmatprep.subr.mxu0 0.0
    %1738 = vmatpush1.msra.mxu0 0.0
    %1739 = vmatprep.subr.mxu0 0.0
    %1740 = vmatpush1.msra.mxu0 0.0
    %1741 = vmatprep.subr.mxu0 0.0
    %1742 = vmatpush1.msra.mxu0 0.0
    %1743 = vmatprep.subr.mxu0 0.0
    %1744 = vmatpush1.msra.mxu0 0.0
    %1745 = vmatprep.subr.mxu0 0.0
    %1746 = vmatpush1.msra.mxu0 0.0
    %1747 = vmatprep.subr.mxu0 0.0
    %1748 = vmatpush1.msra.mxu0 0.0
    %1749 = vmatprep.subr.mxu0 0.0
    %1750 = vmatpush1.msra.mxu0 0.0
    %1751 = vmatprep.subr.mxu0 0.0
    %1752 = vmatpush1.msra.mxu0 0.0
    %1753 = vmatprep.subr.mxu0 0.0
    %1754 = vmatpush1.msra.mxu0 0.0
    %1755 = vmatprep.subr.mxu0 0.0
    %1756 = vmatpush1.msra.mxu0 0.0
    %1757 = vmatprep.subr.mxu0 0.0
    %1758 = vmatpush1.msra.mxu0 0.0
    %1759 = vmatprep.mubr.f32.mxu0 0.0
    %1760 = vmatmul.mubr.f32.gmra.mrb[0].mxu0 %v1388
    %v1761 = vpop.f32.mrb[0].mxu0
    %v1762 = vadd.f32 0.0, %v1761
    %v1763 = vpop.f32.mrb[0].mxu0
    %1764 = vdwg.mxu0
    %1765 = vmatprep.subr.mxu0 0.0
    %1766 = vmatpush1.msra.mxu0 %v647
    %1767 = vmatprep.subr.mxu0 0.0
    %1768 = vmatpush1.msra.mxu0 %v648
    %1769 = vmatprep.subr.mxu0 0.0
    %1770 = vmatpush1.msra.mxu0 %v649
    %1771 = vmatprep.subr.mxu0 0.0
    %1772 = vmatpush1.msra.mxu0 %v650
    %1773 = vmatprep.subr.mxu0 0.0
    %1774 = vmatpush1.msra.mxu0 %v651
    %1775 = vmatprep.subr.mxu0 0.0
    %1776 = vmatpush1.msra.mxu0 %v652
    %1777 = vmatprep.subr.mxu0 0.0
    %1778 = vmatpush1.msra.mxu0 %v653
    %1779 = vmatprep.subr.mxu0 0.0
    %1780 = vmatpush1.msra.mxu0 %v654
    %1781 = vmatprep.subr.mxu0 0.0
    %1782 = vmatpush1.msra.mxu0 %v655
    %1783 = vmatprep.subr.mxu0 0.0
    %1784 = vmatpush1.msra.mxu0 %v656
    %1785 = vmatprep.subr.mxu0 0.0
    %1786 = vmatpush1.msra.mxu0 %v657
    %1787 = vmatprep.subr.mxu0 0.0
    %1788 = vmatpush1.msra.mxu0 %v658
    %1789 = vmatprep.subr.mxu0 0.0
    %1790 = vmatpush1.msra.mxu0 %v659
    %1791 = vmatprep.subr.mxu0 0.0
    %1792 = vmatpush1.msra.mxu0 %v660
    %1793 = vmatprep.subr.mxu0 0.0
    %1794 = vmatpush1.msra.mxu0 %v661
    %1795 = vmatprep.subr.mxu0 0.0
    %1796 = vmatpush1.msra.mxu0 %v662
    %1797 = vmatprep.subr.mxu0 0.0
    %1798 = vmatpush1.msra.mxu0 0.0
    %1799 = vmatprep.subr.mxu0 0.0
    %1800 = vmatpush1.msra.mxu0 0.0
    %1801 = vmatprep.subr.mxu0 0.0
    %1802 = vmatpush1.msra.mxu0 0.0
    %1803 = vmatprep.subr.mxu0 0.0
    %1804 = vmatpush1.msra.mxu0 0.0
    %1805 = vmatprep.subr.mxu0 0.0
    %1806 = vmatpush1.msra.mxu0 0.0
    %1807 = vmatprep.subr.mxu0 0.0
    %1808 = vmatpush1.msra.mxu0 0.0
    %1809 = vmatprep.subr.mxu0 0.0
    %1810 = vmatpush1.msra.mxu0 0.0
    %1811 = vmatprep.subr.mxu0 0.0
    %1812 = vmatpush1.msra.mxu0 0.0
    %1813 = vmatprep.subr.mxu0 0.0
    %1814 = vmatpush1.msra.mxu0 0.0
    %1815 = vmatprep.subr.mxu0 0.0
    %1816 = vmatpush1.msra.mxu0 0.0
    %1817 = vmatprep.subr.mxu0 0.0
    %1818 = vmatpush1.msra.mxu0 0.0
    %1819 = vmatprep.subr.mxu0 0.0
    %1820 = vmatpush1.msra.mxu0 0.0
    %1821 = vmatprep.subr.mxu0 0.0
    %1822 = vmatpush1.msra.mxu0 0.0
    %1823 = vmatprep.subr.mxu0 0.0
    %1824 = vmatpush1.msra.mxu0 0.0
    %1825 = vmatprep.subr.mxu0 0.0
    %1826 = vmatpush1.msra.mxu0 0.0
    %1827 = vmatprep.subr.mxu0 0.0
    %1828 = vmatpush1.msra.mxu0 0.0
    %1829 = vmatprep.mubr.f32.mxu0 0.0
    %1830 = vmatmul.mubr.f32.gmra.mrb[0].mxu0 %v1402
    %v1831 = vpop.f32.mrb[0].mxu0
    %v1832 = vadd.f32 0.0, %v1831
    %v1833 = vpop.f32.mrb[0].mxu0
    %1834 = vdwg.mxu0
    %1835 = vmatprep.subr.mxu0 0.0
    %1836 = vmatpush1.msra.mxu0 %v663
    %1837 = vmatprep.subr.mxu0 0.0
    %1838 = vmatpush1.msra.mxu0 %v664
    %1839 = vmatprep.subr.mxu0 0.0
    %1840 = vmatpush1.msra.mxu0 %v665
    %1841 = vmatprep.subr.mxu0 0.0
    %1842 = vmatpush1.msra.mxu0 %v666
    %1843 = vmatprep.subr.mxu0 0.0
    %1844 = vmatpush1.msra.mxu0 %v667
    %1845 = vmatprep.subr.mxu0 0.0
    %1846 = vmatpush1.msra.mxu0 %v668
    %1847 = vmatprep.subr.mxu0 0.0
    %1848 = vmatpush1.msra.mxu0 %v669
    %1849 = vmatprep.subr.mxu0 0.0
    %1850 = vmatpush1.msra.mxu0 %v670
    %1851 = vmatprep.subr.mxu0 0.0
    %1852 = vmatpush1.msra.mxu0 %v671
    %1853 = vmatprep.subr.mxu0 0.0
    %1854 = vmatpush1.msra.mxu0 %v672
    %1855 = vmatprep.subr.mxu0 0.0
    %1856 = vmatpush1.msra.mxu0 %v673
    %1857 = vmatprep.subr.mxu0 0.0
    %1858 = vmatpush1.msra.mxu0 %v674
    %1859 = vmatprep.subr.mxu0 0.0
    %1860 = vmatpush1.msra.mxu0 %v675
    %1861 = vmatprep.subr.mxu0 0.0
    %1862 = vmatpush1.msra.mxu0 %v676
    %1863 = vmatprep.subr.mxu0 0.0
    %1864 = vmatpush1.msra.mxu0 %v677
    %1865 = vmatprep.subr.mxu0 0.0
    %1866 = vmatpush1.msra.mxu0 %v678
    %1867 = vmatprep.subr.mxu0 0.0
    %1868 = vmatpush1.msra.mxu0 0.0
    %1869 = vmatprep.subr.mxu0 0.0
    %1870 = vmatpush1.msra.mxu0 0.0
    %1871 = vmatprep.subr.mxu0 0.0
    %1872 = vmatpush1.msra.mxu0 0.0
    %1873 = vmatprep.subr.mxu0 0.0
    %1874 = vmatpush1.msra.mxu0 0.0
    %1875 = vmatprep.subr.mxu0 0.0
    %1876 = vmatpush1.msra.mxu0 0.0
    %1877 = vmatprep.subr.mxu0 0.0
    %1878 = vmatpush1.msra.mxu0 0.0
    %1879 = vmatprep.subr.mxu0 0.0
    %1880 = vmatpush1.msra.mxu0 0.0
    %1881 = vmatprep.subr.mxu0 0.0
    %1882 = vmatpush1.msra.mxu0 0.0
    %1883 = vmatprep.subr.mxu0 0.0
    %1884 = vmatpush1.msra.mxu0 0.0
    %1885 = vmatprep.subr.mxu0 0.0
    %1886 = vmatpush1.msra.mxu0 0.0
    %1887 = vmatprep.subr.mxu0 0.0
    %1888 = vmatpush1.msra.mxu0 0.0
    %1889 = vmatprep.subr.mxu0 0.0
    %1890 = vmatpush1.msra.mxu0 0.0
    %1891 = vmatprep.subr.mxu0 0.0
    %1892 = vmatpush1.msra.mxu0 0.0
    %1893 = vmatprep.subr.mxu0 0.0
    %1894 = vmatpush1.msra.mxu0 0.0
    %1895 = vmatprep.subr.mxu0 0.0
    %1896 = vmatpush1.msra.mxu0 0.0
    %1897 = vmatprep.subr.mxu0 0.0
    %1898 = vmatpush1.msra.mxu0 0.0
    %1899 = vmatprep.mubr.f32.mxu0 0.0
    %1900 = vmatmul.mubr.f32.gmra.mrb[0].mxu0 %v1404
    %v1901 = vpop.f32.mrb[0].mxu0
    %v1902 = vadd.f32 0.0, %v1901
    %v1903 = vpop.f32.mrb[0].mxu0
    %1904 = vdwg.mxu0
    %1905 = vmatprep.subr.mxu0 0.0
    %1906 = vmatpush1.msra.mxu0 %v679
    %1907 = vmatprep.subr.mxu0 0.0
    %1908 = vmatpush1.msra.mxu0 %v680
    %1909 = vmatprep.subr.mxu0 0.0
    %1910 = vmatpush1.msra.mxu0 %v681
    %1911 = vmatprep.subr.mxu0 0.0
    %1912 = vmatpush1.msra.mxu0 %v682
    %1913 = vmatprep.subr.mxu0 0.0
    %1914 = vmatpush1.msra.mxu0 %v683
    %1915 = vmatprep.subr.mxu0 0.0
    %1916 = vmatpush1.msra.mxu0 %v684
    %1917 = vmatprep.subr.mxu0 0.0
    %1918 = vmatpush1.msra.mxu0 %v685
    %1919 = vmatprep.subr.mxu0 0.0
    %1920 = vmatpush1.msra.mxu0 %v686
    %1921 = vmatprep.subr.mxu0 0.0
    %1922 = vmatpush1.msra.mxu0 %v687
    %1923 = vmatprep.subr.mxu0 0.0
    %1924 = vmatpush1.msra.mxu0 %v688
    %1925 = vmatprep.subr.mxu0 0.0
    %1926 = vmatpush1.msra.mxu0 %v689
    %1927 = vmatprep.subr.mxu0 0.0
    %1928 = vmatpush1.msra.mxu0 %v690
    %1929 = vmatprep.subr.mxu0 0.0
    %1930 = vmatpush1.msra.mxu0 %v691
    %1931 = vmatprep.subr.mxu0 0.0
    %1932 = vmatpush1.msra.mxu0 %v692
    %1933 = vmatprep.subr.mxu0 0.0
    %1934 = vmatpush1.msra.mxu0 %v693
    %1935 = vmatprep.subr.mxu0 0.0
    %1936 = vmatpush1.msra.mxu0 %v694
    %1937 = vmatprep.subr.mxu0 0.0
    %1938 = vmatpush1.msra.mxu0 0.0
    %1939 = vmatprep.subr.mxu0 0.0
    %1940 = vmatpush1.msra.mxu0 0.0
    %1941 = vmatprep.subr.mxu0 0.0
    %1942 = vmatpush1.msra.mxu0 0.0
    %1943 = vmatprep.subr.mxu0 0.0
    %1944 = vmatpush1.msra.mxu0 0.0
    %1945 = vmatprep.subr.mxu0 0.0
    %1946 = vmatpush1.msra.mxu0 0.0
    %1947 = vmatprep.subr.mxu0 0.0
    %1948 = vmatpush1.msra.mxu0 0.0
    %1949 = vmatprep.subr.mxu0 0.0
    %1950 = vmatpush1.msra.mxu0 0.0
    %1951 = vmatprep.subr.mxu0 0.0
    %1952 = vmatpush1.msra.mxu0 0.0
    %1953 = vmatprep.subr.mxu0 0.0
    %1954 = vmatpush1.msra.mxu0 0.0
    %1955 = vmatprep.subr.mxu0 0.0
    %1956 = vmatpush1.msra.mxu0 0.0
    %1957 = vmatprep.subr.mxu0 0.0
    %1958 = vmatpush1.msra.mxu0 0.0
    %1959 = vmatprep.subr.mxu0 0.0
    %1960 = vmatpush1.msra.mxu0 0.0
    %1961 = vmatprep.subr.mxu0 0.0
    %1962 = vmatpush1.msra.mxu0 0.0
    %1963 = vmatprep.subr.mxu0 0.0
    %1964 = vmatpush1.msra.mxu0 0.0
    %1965 = vmatprep.subr.mxu0 0.0
    %1966 = vmatpush1.msra.mxu0 0.0
    %1967 = vmatprep.subr.mxu0 0.0
    %1968 = vmatpush1.msra.mxu0 0.0
    %1969 = vmatprep.mubr.f32.mxu0 0.0
    %1970 = vmatmul.mubr.f32.gmra.mrb[0].mxu0 %v1406
    %v1971 = vpop.f32.mrb[0].mxu0
    %v1972 = vadd.f32 0.0, %v1971
    %v1973 = vpop.f32.mrb[0].mxu0
    %1974 = vdwg.mxu0
    %v1975 = vld [vmem:[#allocation11] sm:$0xff]
    %v1976 = vld [vmem:[#allocation11 + $0x8] sm:$0xff]
    %v1977 = vld [vmem:[#allocation11 + $0x10] sm:$0xff]
    %v1978 = vld [vmem:[#allocation11 + $0x18] sm:$0xff]
    %v1979 = vld [vmem:[#allocation11 + $0x20] sm:$0xff]
    %v1980 = vld [vmem:[#allocation11 + $0x28] sm:$0xff]
    %v1981 = vld [vmem:[#allocation11 + $0x30] sm:$0xff]
    %v1982 = vld [vmem:[#allocation11 + $0x38] sm:$0xff]
    %v1983 = vld [vmem:[#allocation11 + $0x40] sm:$0xff]
    %v1984 = vld [vmem:[#allocation11 + $0x48] sm:$0xff]
    %v1985 = vld [vmem:[#allocation11 + $0x50] sm:$0xff]
    %v1986 = vld [vmem:[#allocation11 + $0x58] sm:$0xff]
    %v1987 = vld [vmem:[#allocation11 + $0x60] sm:$0xff]
    %v1988 = vld [vmem:[#allocation11 + $0x68] sm:$0xff]
    %v1989 = vld [vmem:[#allocation11 + $0x70] sm:$0xff]
    %v1990 = vld [vmem:[#allocation11 + $0x78] sm:$0xff]
    %v1991 = vld [vmem:[#allocation13] sm:$0xff]
    %v1992 = vld [vmem:[#allocation13 + $0x8] sm:$0xff]
    %v1993 = vld [vmem:[#allocation13 + $0x10] sm:$0xff]
    %v1994 = vld [vmem:[#allocation13 + $0x18] sm:$0xff]
    %v1995 = vld [vmem:[#allocation13 + $0x20] sm:$0xff]
    %v1996 = vld [vmem:[#allocation13 + $0x28] sm:$0xff]
    %v1997 = vld [vmem:[#allocation13 + $0x30] sm:$0xff]
    %v1998 = vld [vmem:[#allocation13 + $0x38] sm:$0xff]
    %v1999 = vld [vmem:[#allocation13 + $0x40] sm:$0xff]
    %v2000 = vld [vmem:[#allocation13 + $0x48] sm:$0xff]
    %v2001 = vld [vmem:[#allocation13 + $0x50] sm:$0xff]
    %v2002 = vld [vmem:[#allocation13 + $0x58] sm:$0xff]
    %v2003 = vld [vmem:[#allocation13 + $0x60] sm:$0xff]
    %v2004 = vld [vmem:[#allocation13 + $0x68] sm:$0xff]
    %v2005 = vld [vmem:[#allocation13 + $0x70] sm:$0xff]
    %v2006 = vld [vmem:[#allocation13 + $0x78] sm:$0xff]
    %v2015 = vrot.slane %v1552, 7
    %v2016 = vsel %vm1325, %v2015, %v1482
    %v2017 = vrot.slane %v1622, 6
    %v2018 = vsel %vm1328, %v2017, %v2016
    %v2019 = vrot.slane %v1692, 5
    %v2020 = vsel %vm1331, %v2019, %v2018
    %v2021 = vrot.slane %v1762, 4
    %v2022 = vsel %vm1334, %v2021, %v2020
    %v2023 = vrot.slane %v1832, 3
    %v2024 = vsel %vm1337, %v2023, %v2022
    %v2025 = vrot.slane %v1902, 2
    %v2026 = vsel %vm1340, %v2025, %v2024
    %v2027 = vrot.slane %v1972, 1
    %v2028 = vsel %vm1343, %v2027, %v2026
    %2030 = vmatprep.subr.mxu0 0.0
    %2031 = vmatpush1.msra.mxu0 %v1991
    %2032 = vmatprep.subr.mxu0 0.0
    %2033 = vmatpush1.msra.mxu0 %v1992
    %2034 = vmatprep.subr.mxu0 0.0
    %2035 = vmatpush1.msra.mxu0 %v1993
    %2036 = vmatprep.subr.mxu0 0.0
    %2037 = vmatpush1.msra.mxu0 %v1994
    %2038 = vmatprep.subr.mxu0 0.0
    %2039 = vmatpush1.msra.mxu0 %v1995
    %2040 = vmatprep.subr.mxu0 0.0
    %2041 = vmatpush1.msra.mxu0 %v1996
    %2042 = vmatprep.subr.mxu0 0.0
    %2043 = vmatpush1.msra.mxu0 %v1997
    %2044 = vmatprep.subr.mxu0 0.0
    %2045 = vmatpush1.msra.mxu0 %v1998
    %2046 = vmatprep.subr.mxu0 0.0
    %2047 = vmatpush1.msra.mxu0 %v1999
    %2048 = vmatprep.subr.mxu0 0.0
    %2049 = vmatpush1.msra.mxu0 %v2000
    %2050 = vmatprep.subr.mxu0 0.0
    %2051 = vmatpush1.msra.mxu0 %v2001
    %2052 = vmatprep.subr.mxu0 0.0
    %2053 = vmatpush1.msra.mxu0 %v2002
    %2054 = vmatprep.subr.mxu0 0.0
    %2055 = vmatpush1.msra.mxu0 %v2003
    %2056 = vmatprep.subr.mxu0 0.0
    %2057 = vmatpush1.msra.mxu0 %v2004
    %2058 = vmatprep.subr.mxu0 0.0
    %2059 = vmatpush1.msra.mxu0 %v2005
    %2060 = vmatprep.subr.mxu0 0.0
    %2061 = vmatpush1.msra.mxu0 %v2006
    %2062 = vmatprep.subr.mxu0 0.0
    %2063 = vmatpush1.msra.mxu0 0.0
    %2064 = vmatprep.subr.mxu0 0.0
    %2065 = vmatpush1.msra.mxu0 0.0
    %2066 = vmatprep.subr.mxu0 0.0
    %2067 = vmatpush1.msra.mxu0 0.0
    %2068 = vmatprep.subr.mxu0 0.0
    %2069 = vmatpush1.msra.mxu0 0.0
    %2070 = vmatprep.subr.mxu0 0.0
    %2071 = vmatpush1.msra.mxu0 0.0
    %2072 = vmatprep.subr.mxu0 0.0
    %2073 = vmatpush1.msra.mxu0 0.0
    %2074 = vmatprep.subr.mxu0 0.0
    %2075 = vmatpush1.msra.mxu0 0.0
    %2076 = vmatprep.subr.mxu0 0.0
    %2077 = vmatpush1.msra.mxu0 0.0
    %2078 = vmatprep.subr.mxu0 0.0
    %2079 = vmatpush1.msra.mxu0 0.0
    %2080 = vmatprep.subr.mxu0 0.0
    %2081 = vmatpush1.msra.mxu0 0.0
    %2082 = vmatprep.subr.mxu0 0.0
    %2083 = vmatpush1.msra.mxu0 0.0
    %2084 = vmatprep.subr.mxu0 0.0
    %2085 = vmatpush1.msra.mxu0 0.0
    %2086 = vmatprep.subr.mxu0 0.0
    %2087 = vmatpush1.msra.mxu0 0.0
    %2088 = vmatprep.subr.mxu0 0.0
    %2089 = vmatpush1.msra.mxu0 0.0
    %2090 = vmatprep.subr.mxu0 0.0
    %2091 = vmatpush1.msra.mxu0 0.0
    %2092 = vmatprep.subr.mxu0 0.0
    %2093 = vmatpush1.msra.mxu0 0.0
    %2094 = vmatprep.mubr.f32.mxu0 0.0
    %2095 = vmatmul.mubr.f32.gmra.mrb[0].mxu0 %v2028
    %v2096 = vpop.f32.mrb[0].mxu0
    %v2097 = vadd.f32 0.0, %v2096
    %v2098 = vpop.f32.mrb[0].mxu0
    %2099 = vdwg.mxu0
    %2100 = vmatprep.subr.mxu0 0.0
    %2101 = vmatpush1.msra.mxu0 %v1975
    %2102 = vmatprep.subr.mxu0 0.0
    %2103 = vmatpush1.msra.mxu0 %v1976
    %2104 = vmatprep.subr.mxu0 0.0
    %2105 = vmatpush1.msra.mxu0 %v1977
    %2106 = vmatprep.subr.mxu0 0.0
    %2107 = vmatpush1.msra.mxu0 %v1978
    %2108 = vmatprep.subr.mxu0 0.0
    %2109 = vmatpush1.msra.mxu0 %v1979
    %2110 = vmatprep.subr.mxu0 0.0
    %2111 = vmatpush1.msra.mxu0 %v1980
    %2112 = vmatprep.subr.mxu0 0.0
    %2113 = vmatpush1.msra.mxu0 %v1981
    %2114 = vmatprep.subr.mxu0 0.0
    %2115 = vmatpush1.msra.mxu0 %v1982
    %2116 = vmatprep.subr.mxu0 0.0
    %2117 = vmatpush1.msra.mxu0 %v1983
    %2118 = vmatprep.subr.mxu0 0.0
    %2119 = vmatpush1.msra.mxu0 %v1984
    %2120 = vmatprep.subr.mxu0 0.0
    %2121 = vmatpush1.msra.mxu0 %v1985
    %2122 = vmatprep.subr.mxu0 0.0
    %2123 = vmatpush1.msra.mxu0 %v1986
    %2124 = vmatprep.subr.mxu0 0.0
    %2125 = vmatpush1.msra.mxu0 %v1987
    %2126 = vmatprep.subr.mxu0 0.0
    %2127 = vmatpush1.msra.mxu0 %v1988
    %2128 = vmatprep.subr.mxu0 0.0
    %2129 = vmatpush1.msra.mxu0 %v1989
    %2130 = vmatprep.subr.mxu0 0.0
    %2131 = vmatpush1.msra.mxu0 %v1990
    %2132 = vmatprep.subr.mxu0 0.0
    %2133 = vmatpush1.msra.mxu0 0.0
    %2134 = vmatprep.subr.mxu0 0.0
    %2135 = vmatpush1.msra.mxu0 0.0
    %2136 = vmatprep.subr.mxu0 0.0
    %2137 = vmatpush1.msra.mxu0 0.0
    %2138 = vmatprep.subr.mxu0 0.0
    %2139 = vmatpush1.msra.mxu0 0.0
    %2140 = vmatprep.subr.mxu0 0.0
    %2141 = vmatpush1.msra.mxu0 0.0
    %2142 = vmatprep.subr.mxu0 0.0
    %2143 = vmatpush1.msra.mxu0 0.0
    %2144 = vmatprep.subr.mxu0 0.0
    %2145 = vmatpush1.msra.mxu0 0.0
    %2146 = vmatprep.subr.mxu0 0.0
    %2147 = vmatpush1.msra.mxu0 0.0
    %2148 = vmatprep.subr.mxu0 0.0
    %2149 = vmatpush1.msra.mxu0 0.0
    %2150 = vmatprep.subr.mxu0 0.0
    %2151 = vmatpush1.msra.mxu0 0.0
    %2152 = vmatprep.subr.mxu0 0.0
    %2153 = vmatpush1.msra.mxu0 0.0
    %2154 = vmatprep.subr.mxu0 0.0
    %2155 = vmatpush1.msra.mxu0 0.0
    %2156 = vmatprep.subr.mxu0 0.0
    %2157 = vmatpush1.msra.mxu0 0.0
    %2158 = vmatprep.subr.mxu0 0.0
    %2159 = vmatpush1.msra.mxu0 0.0
    %2160 = vmatprep.subr.mxu0 0.0
    %2161 = vmatpush1.msra.mxu0 0.0
    %2162 = vmatprep.subr.mxu0 0.0
    %2163 = vmatpush1.msra.mxu0 0.0
    %2164 = vmatprep.mubr.f32.mxu0 0.0
    %2165 = vmatmul.mubr.f32.gmra.mrb[0].mxu0 %v565
    %v2166 = vpop.f32.mrb[0].mxu0
    %v2167 = vadd.f32 %v2097, %v2166
    %v2168 = vpop.f32.mrb[0].mxu0
    %2169 = vdwg.mxu0
    %v2170 = vld [vmem:[%s9] sm:$0x1]
    %v2172 = vlaneseq
    %v2173 = vshrl.u32 %v2172, 7
    %v2174 = vsub.s32 0, %v2173
    %v2175 = vrot.slane %v2170, %v2174
    %v2177 = vadd.f32 %v2167, %v2175
    %v2178 = vtanh.pop %v2177
    %2179 = vst [vmem:[#allocation17] sm:$0xff] %v2178
    // Predicated region
    $region70: #{tpu_custom_call.1} parent=1 // pred_check
      _
    $region71: #{tpu_custom_call.1} parent=1 // pred_check_branch
      %2181 = sbr.rel (0) target = $region73
    $region72: #{tpu_custom_call.1} parent=1 // pred_region
      %s2183 = ssub.s32 128, 128
      %2184 = vsyncadd [#allocation4], %s2183
      %s2186 = sshll.u32 [#allocation14], 4
      %s2187 = int_to_ptr.vmem [resolvable:$true] %s2186
      %2189 = dma.vmem_to_hbm [thread:$0]  %s2187, 128, %s10, [#allocation4]
    $region73: #{tpu_custom_call.1} parent=1 // pred_fallthru
      _
    // Predicated region
    $region74: #{tpu_custom_call.1} parent=1 // pred_check
      _
    $region75: #{tpu_custom_call.1} parent=1 // pred_check_branch
      %2191 = sbr.rel (0) target = $region77
    $region76: #{tpu_custom_call.1} parent=1 // pred_region
      %s2193 = ssub.s32 128, 128
      %2194 = vsyncadd [#allocation16], %s2193
      %s2196 = sshll.u32 [#allocation15], 4
      %s2197 = int_to_ptr.vmem [resolvable:$true] %s2196
      %2199 = dma.vmem_to_hbm [thread:$0]  %s2197, 128, %s11, [#allocation16]
    $region77: #{tpu_custom_call.1} parent=1 // pred_fallthru
      _
    // Predicated region
    $region78: #{tpu_custom_call.1} parent=1 // pred_check
      _
    $region79: #{tpu_custom_call.1} parent=1 // pred_check_branch
      %2201 = sbr.rel (0) target = $region81
    $region80: #{tpu_custom_call.1} parent=1 // pred_region
      %s2203 = ssub.s32 128, 128
      %2204 = vsyncadd [#allocation16], %s2203
      %s2206 = sshll.u32 [#allocation17], 4
      %s2207 = int_to_ptr.vmem [resolvable:$true] %s2206
      %2209 = dma.vmem_to_hbm [thread:$0]  %s2207, 128, %s12, [#allocation16]
    $region81: #{tpu_custom_call.1} parent=1 // pred_fallthru
      _
    // Predicated region
    $region82: #{tpu_custom_call.1} parent=1 // pred_check
      _
    $region83: #{tpu_custom_call.1} parent=1 // pred_check_branch
      %2211 = sbr.rel (0) target = $region85
    $region84: #{tpu_custom_call.1} parent=1 // pred_region
      %2212 = dma.done [#allocation4], 128
    $region85: #{tpu_custom_call.1} parent=1 // pred_fallthru
      _
    // Predicated region
    $region86: #{tpu_custom_call.1} parent=1 // pred_check
      _
    $region87: #{tpu_custom_call.1} parent=1 // pred_check_branch
      %2214 = sbr.rel (0) target = $region89
    $region88: #{tpu_custom_call.1} parent=1 // pred_region
      %2215 = dma.done [#allocation16], 128
    $region89: #{tpu_custom_call.1} parent=1 // pred_fallthru
      _
    // Predicated region
    $region90: #{tpu_custom_call.1} parent=1 // pred_check
      _
    $region91: #{tpu_custom_call.1} parent=1 // pred_check_branch
      %2217 = sbr.rel (0) target = $region93
    $region92: #{tpu_custom_call.1} parent=1 // pred_region
      %2218 = dma.done [#allocation16], 128
    $region93: #{tpu_custom_call.1} parent=1 // pred_fallthru
      _
    %2219 = vsyncpa [#allocation3], 1
    %2220 = vsyncpa [#allocation6], 1
    %2221 = vsyncpa [#allocation9], 1
    %2222 = vsyncpa [#allocation12], 1
    %2223 = vsyncpa [#allocation4], 1
    %2224 = vsyncpa [#allocation16], 1

</llo_original>
